<compile_context>
chip_gen: v7x
topology: tpu7x:2x2x1
jax: 0.10.0
libtpu: 0.0.40
codegen_flags: <defaults>
</compile_context>

<pallas_src>
import functools

import jax
import jax.numpy as jnp
from jax import lax
from jax.experimental import pallas as pl
from jax.experimental.pallas import tpu as pltpu

_LANE = 128
_SUBLANE = 8


def _round_up(x, m):
    return ((x + m - 1) // m) * m


def _sigmoid(x):
    # sigmoid(x) == 0.5*(tanh(x/2)+1): routes the transcendental to the EUP.
    return 0.5 * (jnp.tanh(0.5 * x) + 1.0)


def lstm_recur_kernel(xw_ref, whh_ref, hout_ref, h_sc, c_sc, *, hp, tc, t_total):
    """One grid step = one (batch block, time chunk) of the LSTM recurrence.

    xw_ref : (tc, BB, 4*hp)  bf16/f32  precomputed x@W_ih^T + b (gate preacts)
    whh_ref: (hp, 4*hp)      bf16/f32  recurrent weight, resident (Buffered(1))
    hout_ref: (BB, hp) f32             final hidden state (written on last chunk)
    h_sc/c_sc: (BB, hp) f32            carries across time chunks
    """
    chunk = pl.program_id(1)
    n_chunks = pl.num_programs(1)

    @pl.when(chunk == 0)
    def _():
        h_sc[...] = jnp.zeros_like(h_sc)
        c_sc[...] = jnp.zeros_like(c_sc)

    def make_step(masked):
        def step(i, carry):
            h, c = carry
            # Read W_hh from the ref inside the step: avoids pinning the whole
            # weight in vregs across the unrolled loop (spill storm at big H).
            w = whh_ref[...]
            pre = xw_ref[i].astype(jnp.float32) + jnp.dot(
                h.astype(w.dtype), w, preferred_element_type=jnp.float32)
            # 128-lane aligned gate slices (hp is a multiple of 128).
            i_g = _sigmoid(pre[:, 0 * hp:1 * hp])
            f_g = _sigmoid(pre[:, 1 * hp:2 * hp])
            g_g = jnp.tanh(pre[:, 2 * hp:3 * hp])
            o_g = _sigmoid(pre[:, 3 * hp:4 * hp])
            c_new = f_g * c + i_g * g_g
            h_new = o_g * jnp.tanh(c_new)
            if not masked:
                return h_new, c_new
            valid = (chunk * tc + i) < t_total          # padded tail steps only
            return jnp.where(valid, h_new, h), jnp.where(valid, c_new, c)
        return step

    def run(masked):
        h, c = lax.fori_loop(0, tc, make_step(masked),
                             (h_sc[...], c_sc[...]), unroll=True)
        h_sc[...] = h
        c_sc[...] = c

    if t_total % tc == 0:
        # Static: every chunk is full, never pay the masking selects.
        run(masked=False)
    else:
        # Only the last time chunk needs the per-step validity mask.
        @pl.when(chunk != n_chunks - 1)
        def _():
            run(masked=False)

        @pl.when(chunk == n_chunks - 1)
        def _():
            run(masked=True)

    @pl.when(chunk == n_chunks - 1)
    def _():
        hout_ref[...] = h_sc[...]


def lstm_forward(inputs, params, *, time_chunk=16, batch_block=256,
                 matmul_dtype=jnp.bfloat16, stream_dtype=jnp.bfloat16):
    """inputs: int32 (B, T) token ids. Returns (B, out_dim) log-probs."""
    emb = params["embedding"]            # (V, E)
    w_ih = params["w_ih"]                # (4H, E)  -- PyTorch layout
    w_hh = params["w_hh"]                # (4H, H)
    b_ih = params["b_ih"]                # (4H,)
    b_hh = params["b_hh"]                # (4H,)
    w_out = params["w_out"]              # (O, H)
    b_out = params["b_out"]              # (O,)

    B, T = inputs.shape
    E = emb.shape[1]
    H = w_hh.shape[1]

    Hp = _round_up(H, _LANE)             # lane-aligned per-gate width
    Bp = _round_up(B, _SUBLANE)          # sublane-aligned batch
    batch_block = _round_up(batch_block, _SUBLANE)
    if Bp <= batch_block:
        BB = Bp
    else:
        Bp = _round_up(Bp, batch_block)
        BB = batch_block
    n_bblk = Bp // BB

    stream_isz = jnp.dtype(stream_dtype).itemsize
    mm_isz = jnp.dtype(matmul_dtype).itemsize

    # ---- VMEM budget (re-derived for v7x's 64 MiB): keep the double-buffered
    # streamed xw blocks under ~40 MiB, shrink the time chunk if needed. ----
    TC = max(1, min(time_chunk, T))
    stream_budget = 40 << 20
    while TC > 1 and 2 * TC * BB * 4 * Hp * stream_isz > stream_budget:
        TC -= 1
    n_chunks = pl.cdiv(T, TC)
    Tp = n_chunks * TC

    # ---- Hoisted input projection: one GEMM directly into a lane-aligned
    # (B*T, 4*Hp) slab (W_ih / bias are pre-padded+gate-reordered once; no
    # padded-activation reshape/pad/reshape copy). ----
    w_ih_p = jnp.pad(w_ih.T.reshape(E, 4, H),
                     ((0, 0), (0, 0), (0, Hp - H))).reshape(E, 4 * Hp)
    bias_p = jnp.pad((b_ih + b_hh).reshape(4, H),
                     ((0, 0), (0, Hp - H))).reshape(4 * Hp)

    x = emb[inputs].astype(jnp.float32)                     # (B, T, E)
    xw = x.reshape(B * T, E) @ w_ih_p + bias_p              # (B*T, 4Hp) f32
    xw = xw.reshape(B, T, 4 * Hp).astype(stream_dtype)      # stream in bf16
    xw = jnp.transpose(xw, (1, 0, 2))                       # (T, B, 4Hp)
    # Cheap pads only: time to a chunk multiple, batch to the block size.
    # Zero preacts in padded lanes/rows keep c_pad = h_pad = 0 through the
    # recurrence (g = tanh(0) = 0), and W_hh pad rows/cols are zero.
    xw = jnp.pad(xw, ((0, Tp - T), (0, Bp - B), (0, 0)))    # (Tp, Bp, 4Hp)

    # ---- Recurrent weight: 128-lane aligned per gate, bf16 for the MXU ----
    whh_t = w_hh.T.reshape(H, 4, H)
    whh_t = jnp.pad(whh_t, ((0, Hp - H), (0, 0), (0, Hp - H)))
    whh_t = whh_t.reshape(Hp, 4 * Hp).astype(matmul_dtype)

    kernel = functools.partial(lstm_recur_kernel, hp=Hp, tc=TC, t_total=T)

    xw_block_bytes = TC * BB * 4 * Hp * stream_isz
    whh_bytes = Hp * 4 * Hp * mm_isz                         # single-buffered
    carry_bytes = 2 * BB * Hp * 4
    out_bytes = 2 * BB * Hp * 4
    vmem_needed = 2 * xw_block_bytes + whh_bytes + carry_bytes + out_bytes
    vmem_limit = int(min(64 << 20, max(16 << 20, 2 * vmem_needed + (4 << 20))))

    h_last = pl.pallas_call(
        kernel,
        out_shape=jax.ShapeDtypeStruct((Bp, Hp), jnp.float32),
        grid_spec=pltpu.PrefetchScalarGridSpec(
            num_scalar_prefetch=0,
            grid=(n_bblk, n_chunks),                 # (batch blocks, time)
            in_specs=[
                # Streamed gate preactivations (bf16), double-buffered.
                pl.BlockSpec((TC, BB, 4 * Hp), lambda b, t: (t, b, 0)),
                # Constant recurrent weight block: single-buffer it.
                pl.BlockSpec((Hp, 4 * Hp), lambda b, t: (0, 0),
                             pipeline_mode=pl.Buffered(1)),
            ],
            out_specs=pl.BlockSpec((BB, Hp), lambda b, t: (b, 0)),
            scratch_shapes=[
                pltpu.VMEM((BB, Hp), jnp.float32),   # h carry
                pltpu.VMEM((BB, Hp), jnp.float32),   # c carry
            ],
        ),
        compiler_params=pltpu.CompilerParams(
            # batch blocks are independent (2nd TC on v7x); time is sequential
            dimension_semantics=("parallel", "arbitrary"),
            vmem_limit_bytes=vmem_limit),
    )(xw, whh_t)

    # ---- Once-per-sequence head in plain XLA (out of the hot loop) ----
    h_last = h_last[:B, :H]
    logits = h_last @ w_out.T + b_out
    return jax.nn.log_softmax(logits, axis=1)


def reference_forward(inputs, params):
    """Pure-JAX reference matching PyTorch semantics (for validation)."""
    emb = params["embedding"]
    w_ih, w_hh = params["w_ih"], params["w_hh"]
    b_ih, b_hh = params["b_ih"], params["b_hh"]
    w_out, b_out = params["w_out"], params["b_out"]
    H = w_hh.shape[1]

    x = emb[inputs]                       # (B, T, E)
    B = x.shape[0]
    h = jnp.zeros((B, H), jnp.float32)
    c = jnp.zeros((B, H), jnp.float32)

    def step(carry, x_t):
        h, c = carry
        gates = x_t @ w_ih.T + b_ih + h @ w_hh.T + b_hh
        i = jax.nn.sigmoid(gates[:, 0 * H:1 * H])
        f = jax.nn.sigmoid(gates[:, 1 * H:2 * H])
        g = jnp.tanh(gates[:, 2 * H:3 * H])
        o = jax.nn.sigmoid(gates[:, 3 * H:4 * H])
        c = f * c + i * g
        h = o * jnp.tanh(c)
        return (h, c), None

    (h, c), _ = jax.lax.scan(step, (h, c), jnp.transpose(x, (1, 0, 2)))
    logits = h @ w_out.T + b_out
    return jax.nn.log_softmax(logits, axis=1)


def init_params(key, vocab_size, embedding_dim, hidden_dim, out_dim):
    ks = jax.random.split(key, 7)
    k = 1.0 / jnp.sqrt(hidden_dim)
    return {
        "embedding": jax.random.normal(ks[0], (vocab_size, embedding_dim),
                                       jnp.float32),
        "w_ih": jax.random.uniform(ks[1], (4 * hidden_dim, embedding_dim),
                                   jnp.float32, -k, k),
        "w_hh": jax.random.uniform(ks[2], (4 * hidden_dim, hidden_dim),
                                   jnp.float32, -k, k),
        "b_ih": jax.random.uniform(ks[3], (4 * hidden_dim,),
                                   jnp.float32, -k, k),
        "b_hh": jax.random.uniform(ks[4], (4 * hidden_dim,),
                                   jnp.float32, -k, k),
        "w_out": jax.random.uniform(ks[5], (out_dim, hidden_dim),
                                    jnp.float32, -k, k),
        "b_out": jax.random.uniform(ks[6], (out_dim,),
                                    jnp.float32, -k, k),
    }


if __name__ == "__main__":
    vocab_size, embedding_dim, hidden_dim, out_dim = 32, 16, 32, 8
    batch_size, seq_len = 2, 8

    key = jax.random.PRNGKey(0)
    pkey, ikey = jax.random.split(key)
    params = init_params(pkey, vocab_size, embedding_dim, hidden_dim, out_dim)
    inputs = jax.random.randint(ikey, (batch_size, seq_len), 0, vocab_size,
                                dtype=jnp.int32)

    ref = jax.block_until_ready(reference_forward(inputs, params))

    # 1) Exact-parity check: f32 streamed preacts + f32 recurrent matmul,
    #    TC | T so the unmasked fast path runs.
    out_f32 = jax.block_until_ready(
        lstm_forward(inputs, params, time_chunk=8,
                     matmul_dtype=jnp.float32, stream_dtype=jnp.float32))
    assert out_f32.shape == (batch_size, out_dim)
    assert jnp.allclose(out_f32, ref, rtol=1e-3, atol=1e-3)

    # 2) Lock in the padding/tail invariants: T % TC != 0 exercises the
    #    masked last chunk (and H=32 < 128 already exercises lane padding).
    out_tail = jax.block_until_ready(
        lstm_forward(inputs, params, time_chunk=3,
                     matmul_dtype=jnp.float32, stream_dtype=jnp.float32))
    assert jnp.allclose(out_tail, ref, rtol=1e-3, atol=1e-3)

    # 3) Production mode: bf16 streamed preacts + bf16 MXU operands (f32
    #    accumulation, f32 carries/elementwise). Tolerance covers bf16
    #    rounding of the preactivation and of h on the MXU path only.
    out_bf16 = jax.block_until_ready(
        lstm_forward(inputs, params, matmul_dtype=jnp.bfloat16,
                     stream_dtype=jnp.bfloat16))
    assert out_bf16.shape == (batch_size, out_dim)
    assert jnp.allclose(out_bf16, ref, rtol=3e-2, atol=3e-2)

    print("KERNEL_OK")
</pallas_src>

<mosaic_0001>
module attributes {stable_mosaic.version = 11 : i64} {
  func.func @lstm_recur_kernel(%arg0: i32, %arg1: i32, %arg2: memref<8x8x512xf32, #tpu.memory_space<vmem>>, %arg3: memref<128x512xf32, #tpu.memory_space<vmem>>, %arg4: memref<8x128xf32, #tpu.memory_space<vmem>>, %arg5: memref<8x128xf32, #tpu.memory_space<vmem>>, %arg6: memref<8x128xf32, #tpu.memory_space<vmem>>) attributes {dimension_semantics = [#tpu.dimension_semantics<parallel>, #tpu.dimension_semantics<arbitrary>], iteration_bounds = array<i64: 1, 1>, scalar_prefetch = 0 : i64, scratch_operands = 2 : i64, tpu.core_type = #tpu.core_type<tc>, window_params = [{transform_indices = @transform_0, window_bounds = array<i64: 8, 8, 512>}, {pipeline_mode = #tpu.pipeline_mode<synchronous>, transform_indices = @transform_1, window_bounds = array<i64: 128, 512>}, {transform_indices = @transform_2, window_bounds = array<i64: 8, 128>}]} {
    %c0_i32 = arith.constant 0 : i32
    %0 = arith.cmpi eq, %arg1, %c0_i32 : i32
    %1 = arith.extui %0 : i1 to i32
    %c0_i32_0 = arith.constant 0 : i32
    %2 = arith.cmpi ne, %1, %c0_i32_0 : i32
    scf.if %2 {
      %cst_122 = arith.constant 0.000000e+00 : f32
      %306 = vector.broadcast %cst_122 : f32 to vector<8x128xf32>
      %c0_123 = arith.constant 0 : index
      %c0_124 = arith.constant 0 : index
      %307 = vector.load %arg5[%c0_123, %c0_124] : memref<8x128xf32, #tpu.memory_space<vmem>>, vector<8x128xf32>
      tpu.vector_store %arg5[%c0_123, %c0_124], %306 {strides = array<i32>} : memref<8x128xf32, #tpu.memory_space<vmem>>, vector<8x128xf32>,
      %cst_125 = arith.constant 0.000000e+00 : f32
      %308 = vector.broadcast %cst_125 : f32 to vector<8x128xf32>
      %c0_126 = arith.constant 0 : index
      %c0_127 = arith.constant 0 : index
      %309 = vector.load %arg6[%c0_126, %c0_127] : memref<8x128xf32, #tpu.memory_space<vmem>>, vector<8x128xf32>
      tpu.vector_store %arg6[%c0_126, %c0_127], %308 {strides = array<i32>} : memref<8x128xf32, #tpu.memory_space<vmem>>, vector<8x128xf32>,
    } else {
    }
    %c0 = arith.constant 0 : index
    %c0_1 = arith.constant 0 : index
    %3 = vector.load %arg5[%c0, %c0_1] : memref<8x128xf32, #tpu.memory_space<vmem>>, vector<8x128xf32>
    %c0_2 = arith.constant 0 : index
    %c0_3 = arith.constant 0 : index
    %4 = vector.load %arg6[%c0_2, %c0_3] : memref<8x128xf32, #tpu.memory_space<vmem>>, vector<8x128xf32>
    %c0_i32_4 = arith.constant 0 : i32
    %c0_5 = arith.constant 0 : index
    %c0_6 = arith.constant 0 : index
    %5 = vector.load %arg3[%c0_5, %c0_6] : memref<128x512xf32, #tpu.memory_space<vmem>>, vector<128x512xf32>
    %6 = arith.index_cast %c0_i32_4 : i32 to index
    %c0_7 = arith.constant 0 : index
    %c0_8 = arith.constant 0 : index
    %7 = vector.load %arg2[%6, %c0_7, %c0_8] : memref<8x8x512xf32, #tpu.memory_space<vmem>>, vector<1x8x512xf32>
    %8 = vector.shape_cast %7 : vector<1x8x512xf32> to vector<8x512xf32>
    %cst = arith.constant dense<0.000000e+00> : vector<8x512xf32>
    %9 = tpu.matmul %3, %5, %cst {dimension_numbers = #tpu.dot_dimension_numbers<[1], [0], [0], [1], [0, 0, 1, 1], [], []>} : vector<8x128xf32>, vector<128x512xf32>, vector<8x512xf32> -> vector<8x512xf32>
    %10 = arith.addf %8, %9 : vector<8x512xf32>
    %11 = vector.extract_strided_slice %10 {offsets = [0, 0], sizes = [8, 128], strides = [1, 1]} : vector<8x512xf32> to vector<8x128xf32>
    %cst_9 = arith.constant 5.000000e-01 : f32
    %12 = vector.broadcast %cst_9 : f32 to vector<8x128xf32>
    %13 = arith.mulf %12, %11 : vector<8x128xf32>
    %14 = math.tanh %13 : vector<8x128xf32>
    %cst_10 = arith.constant 1.000000e+00 : f32
    %15 = vector.broadcast %cst_10 : f32 to vector<8x128xf32>
    %16 = arith.addf %14, %15 : vector<8x128xf32>
    %cst_11 = arith.constant 5.000000e-01 : f32
    %17 = vector.broadcast %cst_11 : f32 to vector<8x128xf32>
    %18 = arith.mulf %17, %16 : vector<8x128xf32>
    %19 = vector.extract_strided_slice %10 {offsets = [0, 128], sizes = [8, 128], strides = [1, 1]} : vector<8x512xf32> to vector<8x128xf32>
    %cst_12 = arith.constant 5.000000e-01 : f32
    %20 = vector.broadcast %cst_12 : f32 to vector<8x128xf32>
    %21 = arith.mulf %20, %19 : vector<8x128xf32>
    %22 = math.tanh %21 : vector<8x128xf32>
    %cst_13 = arith.constant 1.000000e+00 : f32
    %23 = vector.broadcast %cst_13 : f32 to vector<8x128xf32>
    %24 = arith.addf %22, %23 : vector<8x128xf32>
    %cst_14 = arith.constant 5.000000e-01 : f32
    %25 = vector.broadcast %cst_14 : f32 to vector<8x128xf32>
    %26 = arith.mulf %25, %24 : vector<8x128xf32>
    %27 = vector.extract_strided_slice %10 {offsets = [0, 256], sizes = [8, 128], strides = [1, 1]} : vector<8x512xf32> to vector<8x128xf32>
    %28 = math.tanh %27 : vector<8x128xf32>
    %29 = vector.extract_strided_slice %10 {offsets = [0, 384], sizes = [8, 128], strides = [1, 1]} : vector<8x512xf32> to vector<8x128xf32>
    %cst_15 = arith.constant 5.000000e-01 : f32
    %30 = vector.broadcast %cst_15 : f32 to vector<8x128xf32>
    %31 = arith.mulf %30, %29 : vector<8x128xf32>
    %32 = math.tanh %31 : vector<8x128xf32>
    %cst_16 = arith.constant 1.000000e+00 : f32
    %33 = vector.broadcast %cst_16 : f32 to vector<8x128xf32>
    %34 = arith.addf %32, %33 : vector<8x128xf32>
    %cst_17 = arith.constant 5.000000e-01 : f32
    %35 = vector.broadcast %cst_17 : f32 to vector<8x128xf32>
    %36 = arith.mulf %35, %34 : vector<8x128xf32>
    %37 = arith.mulf %26, %4 : vector<8x128xf32>
    %38 = arith.mulf %18, %28 : vector<8x128xf32>
    %39 = arith.addf %37, %38 : vector<8x128xf32>
    %40 = math.tanh %39 : vector<8x128xf32>
    %41 = arith.mulf %36, %40 : vector<8x128xf32>
    %c1_i32 = arith.constant 1 : i32
    %c0_18 = arith.constant 0 : index
    %c0_19 = arith.constant 0 : index
    %42 = vector.load %arg3[%c0_18, %c0_19] : memref<128x512xf32, #tpu.memory_space<vmem>>, vector<128x512xf32>
    %43 = arith.index_cast %c1_i32 : i32 to index
    %c0_20 = arith.constant 0 : index
    %c0_21 = arith.constant 0 : index
    %44 = vector.load %arg2[%43, %c0_20, %c0_21] : memref<8x8x512xf32, #tpu.memory_space<vmem>>, vector<1x8x512xf32>
    %45 = vector.shape_cast %44 : vector<1x8x512xf32> to vector<8x512xf32>
    %cst_22 = arith.constant dense<0.000000e+00> : vector<8x512xf32>
    %46 = tpu.matmul %41, %42, %cst_22 {dimension_numbers = #tpu.dot_dimension_numbers<[1], [0], [0], [1], [0, 0, 1, 1], [], []>} : vector<8x128xf32>, vector<128x512xf32>, vector<8x512xf32> -> vector<8x512xf32>
    %47 = arith.addf %45, %46 : vector<8x512xf32>
    %48 = vector.extract_strided_slice %47 {offsets = [0, 0], sizes = [8, 128], strides = [1, 1]} : vector<8x512xf32> to vector<8x128xf32>
    %cst_23 = arith.constant 5.000000e-01 : f32
    %49 = vector.broadcast %cst_23 : f32 to vector<8x128xf32>
    %50 = arith.mulf %49, %48 : vector<8x128xf32>
    %51 = math.tanh %50 : vector<8x128xf32>
    %cst_24 = arith.constant 1.000000e+00 : f32
    %52 = vector.broadcast %cst_24 : f32 to vector<8x128xf32>
    %53 = arith.addf %51, %52 : vector<8x128xf32>
    %cst_25 = arith.constant 5.000000e-01 : f32
    %54 = vector.broadcast %cst_25 : f32 to vector<8x128xf32>
    %55 = arith.mulf %54, %53 : vector<8x128xf32>
    %56 = vector.extract_strided_slice %47 {offsets = [0, 128], sizes = [8, 128], strides = [1, 1]} : vector<8x512xf32> to vector<8x128xf32>
    %cst_26 = arith.constant 5.000000e-01 : f32
    %57 = vector.broadcast %cst_26 : f32 to vector<8x128xf32>
    %58 = arith.mulf %57, %56 : vector<8x128xf32>
    %59 = math.tanh %58 : vector<8x128xf32>
    %cst_27 = arith.constant 1.000000e+00 : f32
    %60 = vector.broadcast %cst_27 : f32 to vector<8x128xf32>
    %61 = arith.addf %59, %60 : vector<8x128xf32>
    %cst_28 = arith.constant 5.000000e-01 : f32
    %62 = vector.broadcast %cst_28 : f32 to vector<8x128xf32>
    %63 = arith.mulf %62, %61 : vector<8x128xf32>
    %64 = vector.extract_strided_slice %47 {offsets = [0, 256], sizes = [8, 128], strides = [1, 1]} : vector<8x512xf32> to vector<8x128xf32>
    %65 = math.tanh %64 : vector<8x128xf32>
    %66 = vector.extract_strided_slice %47 {offsets = [0, 384], sizes = [8, 128], strides = [1, 1]} : vector<8x512xf32> to vector<8x128xf32>
    %cst_29 = arith.constant 5.000000e-01 : f32
    %67 = vector.broadcast %cst_29 : f32 to vector<8x128xf32>
    %68 = arith.mulf %67, %66 : vector<8x128xf32>
    %69 = math.tanh %68 : vector<8x128xf32>
    %cst_30 = arith.constant 1.000000e+00 : f32
    %70 = vector.broadcast %cst_30 : f32 to vector<8x128xf32>
    %71 = arith.addf %69, %70 : vector<8x128xf32>
    %cst_31 = arith.constant 5.000000e-01 : f32
    %72 = vector.broadcast %cst_31 : f32 to vector<8x128xf32>
    %73 = arith.mulf %72, %71 : vector<8x128xf32>
    %74 = arith.mulf %63, %39 : vector<8x128xf32>
    %75 = arith.mulf %55, %65 : vector<8x128xf32>
    %76 = arith.addf %74, %75 : vector<8x128xf32>
    %77 = math.tanh %76 : vector<8x128xf32>
    %78 = arith.mulf %73, %77 : vector<8x128xf32>
    %c2_i32 = arith.constant 2 : i32
    %c0_32 = arith.constant 0 : index
    %c0_33 = arith.constant 0 : index
    %79 = vector.load %arg3[%c0_32, %c0_33] : memref<128x512xf32, #tpu.memory_space<vmem>>, vector<128x512xf32>
    %80 = arith.index_cast %c2_i32 : i32 to index
    %c0_34 = arith.constant 0 : index
    %c0_35 = arith.constant 0 : index
    %81 = vector.load %arg2[%80, %c0_34, %c0_35] : memref<8x8x512xf32, #tpu.memory_space<vmem>>, vector<1x8x512xf32>
    %82 = vector.shape_cast %81 : vector<1x8x512xf32> to vector<8x512xf32>
    %cst_36 = arith.constant dense<0.000000e+00> : vector<8x512xf32>
    %83 = tpu.matmul %78, %79, %cst_36 {dimension_numbers = #tpu.dot_dimension_numbers<[1], [0], [0], [1], [0, 0, 1, 1], [], []>} : vector<8x128xf32>, vector<128x512xf32>, vector<8x512xf32> -> vector<8x512xf32>
    %84 = arith.addf %82, %83 : vector<8x512xf32>
    %85 = vector.extract_strided_slice %84 {offsets = [0, 0], sizes = [8, 128], strides = [1, 1]} : vector<8x512xf32> to vector<8x128xf32>
    %cst_37 = arith.constant 5.000000e-01 : f32
    %86 = vector.broadcast %cst_37 : f32 to vector<8x128xf32>
    %87 = arith.mulf %86, %85 : vector<8x128xf32>
    %88 = math.tanh %87 : vector<8x128xf32>
    %cst_38 = arith.constant 1.000000e+00 : f32
    %89 = vector.broadcast %cst_38 : f32 to vector<8x128xf32>
    %90 = arith.addf %88, %89 : vector<8x128xf32>
    %cst_39 = arith.constant 5.000000e-01 : f32
    %91 = vector.broadcast %cst_39 : f32 to vector<8x128xf32>
    %92 = arith.mulf %91, %90 : vector<8x128xf32>
    %93 = vector.extract_strided_slice %84 {offsets = [0, 128], sizes = [8, 128], strides = [1, 1]} : vector<8x512xf32> to vector<8x128xf32>
    %cst_40 = arith.constant 5.000000e-01 : f32
    %94 = vector.broadcast %cst_40 : f32 to vector<8x128xf32>
    %95 = arith.mulf %94, %93 : vector<8x128xf32>
    %96 = math.tanh %95 : vector<8x128xf32>
    %cst_41 = arith.constant 1.000000e+00 : f32
    %97 = vector.broadcast %cst_41 : f32 to vector<8x128xf32>
    %98 = arith.addf %96, %97 : vector<8x128xf32>
    %cst_42 = arith.constant 5.000000e-01 : f32
    %99 = vector.broadcast %cst_42 : f32 to vector<8x128xf32>
    %100 = arith.mulf %99, %98 : vector<8x128xf32>
    %101 = vector.extract_strided_slice %84 {offsets = [0, 256], sizes = [8, 128], strides = [1, 1]} : vector<8x512xf32> to vector<8x128xf32>
    %102 = math.tanh %101 : vector<8x128xf32>
    %103 = vector.extract_strided_slice %84 {offsets = [0, 384], sizes = [8, 128], strides = [1, 1]} : vector<8x512xf32> to vector<8x128xf32>
    %cst_43 = arith.constant 5.000000e-01 : f32
    %104 = vector.broadcast %cst_43 : f32 to vector<8x128xf32>
    %105 = arith.mulf %104, %103 : vector<8x128xf32>
    %106 = math.tanh %105 : vector<8x128xf32>
    %cst_44 = arith.constant 1.000000e+00 : f32
    %107 = vector.broadcast %cst_44 : f32 to vector<8x128xf32>
    %108 = arith.addf %106, %107 : vector<8x128xf32>
    %cst_45 = arith.constant 5.000000e-01 : f32
    %109 = vector.broadcast %cst_45 : f32 to vector<8x128xf32>
    %110 = arith.mulf %109, %108 : vector<8x128xf32>
    %111 = arith.mulf %100, %76 : vector<8x128xf32>
    %112 = arith.mulf %92, %102 : vector<8x128xf32>
    %113 = arith.addf %111, %112 : vector<8x128xf32>
    %114 = math.tanh %113 : vector<8x128xf32>
    %115 = arith.mulf %110, %114 : vector<8x128xf32>
    %c3_i32 = arith.constant 3 : i32
    %c0_46 = arith.constant 0 : index
    %c0_47 = arith.constant 0 : index
    %116 = vector.load %arg3[%c0_46, %c0_47] : memref<128x512xf32, #tpu.memory_space<vmem>>, vector<128x512xf32>
    %117 = arith.index_cast %c3_i32 : i32 to index
    %c0_48 = arith.constant 0 : index
    %c0_49 = arith.constant 0 : index
    %118 = vector.load %arg2[%117, %c0_48, %c0_49] : memref<8x8x512xf32, #tpu.memory_space<vmem>>, vector<1x8x512xf32>
    %119 = vector.shape_cast %118 : vector<1x8x512xf32> to vector<8x512xf32>
    %cst_50 = arith.constant dense<0.000000e+00> : vector<8x512xf32>
    %120 = tpu.matmul %115, %116, %cst_50 {dimension_numbers = #tpu.dot_dimension_numbers<[1], [0], [0], [1], [0, 0, 1, 1], [], []>} : vector<8x128xf32>, vector<128x512xf32>, vector<8x512xf32> -> vector<8x512xf32>
    %121 = arith.addf %119, %120 : vector<8x512xf32>
    %122 = vector.extract_strided_slice %121 {offsets = [0, 0], sizes = [8, 128], strides = [1, 1]} : vector<8x512xf32> to vector<8x128xf32>
    %cst_51 = arith.constant 5.000000e-01 : f32
    %123 = vector.broadcast %cst_51 : f32 to vector<8x128xf32>
    %124 = arith.mulf %123, %122 : vector<8x128xf32>
    %125 = math.tanh %124 : vector<8x128xf32>
    %cst_52 = arith.constant 1.000000e+00 : f32
    %126 = vector.broadcast %cst_52 : f32 to vector<8x128xf32>
    %127 = arith.addf %125, %126 : vector<8x128xf32>
    %cst_53 = arith.constant 5.000000e-01 : f32
    %128 = vector.broadcast %cst_53 : f32 to vector<8x128xf32>
    %129 = arith.mulf %128, %127 : vector<8x128xf32>
    %130 = vector.extract_strided_slice %121 {offsets = [0, 128], sizes = [8, 128], strides = [1, 1]} : vector<8x512xf32> to vector<8x128xf32>
    %cst_54 = arith.constant 5.000000e-01 : f32
    %131 = vector.broadcast %cst_54 : f32 to vector<8x128xf32>
    %132 = arith.mulf %131, %130 : vector<8x128xf32>
    %133 = math.tanh %132 : vector<8x128xf32>
    %cst_55 = arith.constant 1.000000e+00 : f32
    %134 = vector.broadcast %cst_55 : f32 to vector<8x128xf32>
    %135 = arith.addf %133, %134 : vector<8x128xf32>
    %cst_56 = arith.constant 5.000000e-01 : f32
    %136 = vector.broadcast %cst_56 : f32 to vector<8x128xf32>
    %137 = arith.mulf %136, %135 : vector<8x128xf32>
    %138 = vector.extract_strided_slice %121 {offsets = [0, 256], sizes = [8, 128], strides = [1, 1]} : vector<8x512xf32> to vector<8x128xf32>
    %139 = math.tanh %138 : vector<8x128xf32>
    %140 = vector.extract_strided_slice %121 {offsets = [0, 384], sizes = [8, 128], strides = [1, 1]} : vector<8x512xf32> to vector<8x128xf32>
    %cst_57 = arith.constant 5.000000e-01 : f32
    %141 = vector.broadcast %cst_57 : f32 to vector<8x128xf32>
    %142 = arith.mulf %141, %140 : vector<8x128xf32>
    %143 = math.tanh %142 : vector<8x128xf32>
    %cst_58 = arith.constant 1.000000e+00 : f32
    %144 = vector.broadcast %cst_58 : f32 to vector<8x128xf32>
    %145 = arith.addf %143, %144 : vector<8x128xf32>
    %cst_59 = arith.constant 5.000000e-01 : f32
    %146 = vector.broadcast %cst_59 : f32 to vector<8x128xf32>
    %147 = arith.mulf %146, %145 : vector<8x128xf32>
    %148 = arith.mulf %137, %113 : vector<8x128xf32>
    %149 = arith.mulf %129, %139 : vector<8x128xf32>
    %150 = arith.addf %148, %149 : vector<8x128xf32>
    %151 = math.tanh %150 : vector<8x128xf32>
    %152 = arith.mulf %147, %151 : vector<8x128xf32>
    %c4_i32 = arith.constant 4 : i32
    %c0_60 = arith.constant 0 : index
    %c0_61 = arith.constant 0 : index
    %153 = vector.load %arg3[%c0_60, %c0_61] : memref<128x512xf32, #tpu.memory_space<vmem>>, vector<128x512xf32>
    %154 = arith.index_cast %c4_i32 : i32 to index
    %c0_62 = arith.constant 0 : index
    %c0_63 = arith.constant 0 : index
    %155 = vector.load %arg2[%154, %c0_62, %c0_63] : memref<8x8x512xf32, #tpu.memory_space<vmem>>, vector<1x8x512xf32>
    %156 = vector.shape_cast %155 : vector<1x8x512xf32> to vector<8x512xf32>
    %cst_64 = arith.constant dense<0.000000e+00> : vector<8x512xf32>
    %157 = tpu.matmul %152, %153, %cst_64 {dimension_numbers = #tpu.dot_dimension_numbers<[1], [0], [0], [1], [0, 0, 1, 1], [], []>} : vector<8x128xf32>, vector<128x512xf32>, vector<8x512xf32> -> vector<8x512xf32>
    %158 = arith.addf %156, %157 : vector<8x512xf32>
    %159 = vector.extract_strided_slice %158 {offsets = [0, 0], sizes = [8, 128], strides = [1, 1]} : vector<8x512xf32> to vector<8x128xf32>
    %cst_65 = arith.constant 5.000000e-01 : f32
    %160 = vector.broadcast %cst_65 : f32 to vector<8x128xf32>
    %161 = arith.mulf %160, %159 : vector<8x128xf32>
    %162 = math.tanh %161 : vector<8x128xf32>
    %cst_66 = arith.constant 1.000000e+00 : f32
    %163 = vector.broadcast %cst_66 : f32 to vector<8x128xf32>
    %164 = arith.addf %162, %163 : vector<8x128xf32>
    %cst_67 = arith.constant 5.000000e-01 : f32
    %165 = vector.broadcast %cst_67 : f32 to vector<8x128xf32>
    %166 = arith.mulf %165, %164 : vector<8x128xf32>
    %167 = vector.extract_strided_slice %158 {offsets = [0, 128], sizes = [8, 128], strides = [1, 1]} : vector<8x512xf32> to vector<8x128xf32>
    %cst_68 = arith.constant 5.000000e-01 : f32
    %168 = vector.broadcast %cst_68 : f32 to vector<8x128xf32>
    %169 = arith.mulf %168, %167 : vector<8x128xf32>
    %170 = math.tanh %169 : vector<8x128xf32>
    %cst_69 = arith.constant 1.000000e+00 : f32
    %171 = vector.broadcast %cst_69 : f32 to vector<8x128xf32>
    %172 = arith.addf %170, %171 : vector<8x128xf32>
    %cst_70 = arith.constant 5.000000e-01 : f32
    %173 = vector.broadcast %cst_70 : f32 to vector<8x128xf32>
    %174 = arith.mulf %173, %172 : vector<8x128xf32>
    %175 = vector.extract_strided_slice %158 {offsets = [0, 256], sizes = [8, 128], strides = [1, 1]} : vector<8x512xf32> to vector<8x128xf32>
    %176 = math.tanh %175 : vector<8x128xf32>
    %177 = vector.extract_strided_slice %158 {offsets = [0, 384], sizes = [8, 128], strides = [1, 1]} : vector<8x512xf32> to vector<8x128xf32>
    %cst_71 = arith.constant 5.000000e-01 : f32
    %178 = vector.broadcast %cst_71 : f32 to vector<8x128xf32>
    %179 = arith.mulf %178, %177 : vector<8x128xf32>
    %180 = math.tanh %179 : vector<8x128xf32>
    %cst_72 = arith.constant 1.000000e+00 : f32
    %181 = vector.broadcast %cst_72 : f32 to vector<8x128xf32>
    %182 = arith.addf %180, %181 : vector<8x128xf32>
    %cst_73 = arith.constant 5.000000e-01 : f32
    %183 = vector.broadcast %cst_73 : f32 to vector<8x128xf32>
    %184 = arith.mulf %183, %182 : vector<8x128xf32>
    %185 = arith.mulf %174, %150 : vector<8x128xf32>
    %186 = arith.mulf %166, %176 : vector<8x128xf32>
    %187 = arith.addf %185, %186 : vector<8x128xf32>
    %188 = math.tanh %187 : vector<8x128xf32>
    %189 = arith.mulf %184, %188 : vector<8x128xf32>
    %c5_i32 = arith.constant 5 : i32
    %c0_74 = arith.constant 0 : index
    %c0_75 = arith.constant 0 : index
    %190 = vector.load %arg3[%c0_74, %c0_75] : memref<128x512xf32, #tpu.memory_space<vmem>>, vector<128x512xf32>
    %191 = arith.index_cast %c5_i32 : i32 to index
    %c0_76 = arith.constant 0 : index
    %c0_77 = arith.constant 0 : index
    %192 = vector.load %arg2[%191, %c0_76, %c0_77] : memref<8x8x512xf32, #tpu.memory_space<vmem>>, vector<1x8x512xf32>
    %193 = vector.shape_cast %192 : vector<1x8x512xf32> to vector<8x512xf32>
    %cst_78 = arith.constant dense<0.000000e+00> : vector<8x512xf32>
    %194 = tpu.matmul %189, %190, %cst_78 {dimension_numbers = #tpu.dot_dimension_numbers<[1], [0], [0], [1], [0, 0, 1, 1], [], []>} : vector<8x128xf32>, vector<128x512xf32>, vector<8x512xf32> -> vector<8x512xf32>
    %195 = arith.addf %193, %194 : vector<8x512xf32>
    %196 = vector.extract_strided_slice %195 {offsets = [0, 0], sizes = [8, 128], strides = [1, 1]} : vector<8x512xf32> to vector<8x128xf32>
    %cst_79 = arith.constant 5.000000e-01 : f32
    %197 = vector.broadcast %cst_79 : f32 to vector<8x128xf32>
    %198 = arith.mulf %197, %196 : vector<8x128xf32>
    %199 = math.tanh %198 : vector<8x128xf32>
    %cst_80 = arith.constant 1.000000e+00 : f32
    %200 = vector.broadcast %cst_80 : f32 to vector<8x128xf32>
    %201 = arith.addf %199, %200 : vector<8x128xf32>
    %cst_81 = arith.constant 5.000000e-01 : f32
    %202 = vector.broadcast %cst_81 : f32 to vector<8x128xf32>
    %203 = arith.mulf %202, %201 : vector<8x128xf32>
    %204 = vector.extract_strided_slice %195 {offsets = [0, 128], sizes = [8, 128], strides = [1, 1]} : vector<8x512xf32> to vector<8x128xf32>
    %cst_82 = arith.constant 5.000000e-01 : f32
    %205 = vector.broadcast %cst_82 : f32 to vector<8x128xf32>
    %206 = arith.mulf %205, %204 : vector<8x128xf32>
    %207 = math.tanh %206 : vector<8x128xf32>
    %cst_83 = arith.constant 1.000000e+00 : f32
    %208 = vector.broadcast %cst_83 : f32 to vector<8x128xf32>
    %209 = arith.addf %207, %208 : vector<8x128xf32>
    %cst_84 = arith.constant 5.000000e-01 : f32
    %210 = vector.broadcast %cst_84 : f32 to vector<8x128xf32>
    %211 = arith.mulf %210, %209 : vector<8x128xf32>
    %212 = vector.extract_strided_slice %195 {offsets = [0, 256], sizes = [8, 128], strides = [1, 1]} : vector<8x512xf32> to vector<8x128xf32>
    %213 = math.tanh %212 : vector<8x128xf32>
    %214 = vector.extract_strided_slice %195 {offsets = [0, 384], sizes = [8, 128], strides = [1, 1]} : vector<8x512xf32> to vector<8x128xf32>
    %cst_85 = arith.constant 5.000000e-01 : f32
    %215 = vector.broadcast %cst_85 : f32 to vector<8x128xf32>
    %216 = arith.mulf %215, %214 : vector<8x128xf32>
    %217 = math.tanh %216 : vector<8x128xf32>
    %cst_86 = arith.constant 1.000000e+00 : f32
    %218 = vector.broadcast %cst_86 : f32 to vector<8x128xf32>
    %219 = arith.addf %217, %218 : vector<8x128xf32>
    %cst_87 = arith.constant 5.000000e-01 : f32
    %220 = vector.broadcast %cst_87 : f32 to vector<8x128xf32>
    %221 = arith.mulf %220, %219 : vector<8x128xf32>
    %222 = arith.mulf %211, %187 : vector<8x128xf32>
    %223 = arith.mulf %203, %213 : vector<8x128xf32>
    %224 = arith.addf %222, %223 : vector<8x128xf32>
    %225 = math.tanh %224 : vector<8x128xf32>
    %226 = arith.mulf %221, %225 : vector<8x128xf32>
    %c6_i32 = arith.constant 6 : i32
    %c0_88 = arith.constant 0 : index
    %c0_89 = arith.constant 0 : index
    %227 = vector.load %arg3[%c0_88, %c0_89] : memref<128x512xf32, #tpu.memory_space<vmem>>, vector<128x512xf32>
    %228 = arith.index_cast %c6_i32 : i32 to index
    %c0_90 = arith.constant 0 : index
    %c0_91 = arith.constant 0 : index
    %229 = vector.load %arg2[%228, %c0_90, %c0_91] : memref<8x8x512xf32, #tpu.memory_space<vmem>>, vector<1x8x512xf32>
    %230 = vector.shape_cast %229 : vector<1x8x512xf32> to vector<8x512xf32>
    %cst_92 = arith.constant dense<0.000000e+00> : vector<8x512xf32>
    %231 = tpu.matmul %226, %227, %cst_92 {dimension_numbers = #tpu.dot_dimension_numbers<[1], [0], [0], [1], [0, 0, 1, 1], [], []>} : vector<8x128xf32>, vector<128x512xf32>, vector<8x512xf32> -> vector<8x512xf32>
    %232 = arith.addf %230, %231 : vector<8x512xf32>
    %233 = vector.extract_strided_slice %232 {offsets = [0, 0], sizes = [8, 128], strides = [1, 1]} : vector<8x512xf32> to vector<8x128xf32>
    %cst_93 = arith.constant 5.000000e-01 : f32
    %234 = vector.broadcast %cst_93 : f32 to vector<8x128xf32>
    %235 = arith.mulf %234, %233 : vector<8x128xf32>
    %236 = math.tanh %235 : vector<8x128xf32>
    %cst_94 = arith.constant 1.000000e+00 : f32
    %237 = vector.broadcast %cst_94 : f32 to vector<8x128xf32>
    %238 = arith.addf %236, %237 : vector<8x128xf32>
    %cst_95 = arith.constant 5.000000e-01 : f32
    %239 = vector.broadcast %cst_95 : f32 to vector<8x128xf32>
    %240 = arith.mulf %239, %238 : vector<8x128xf32>
    %241 = vector.extract_strided_slice %232 {offsets = [0, 128], sizes = [8, 128], strides = [1, 1]} : vector<8x512xf32> to vector<8x128xf32>
    %cst_96 = arith.constant 5.000000e-01 : f32
    %242 = vector.broadcast %cst_96 : f32 to vector<8x128xf32>
    %243 = arith.mulf %242, %241 : vector<8x128xf32>
    %244 = math.tanh %243 : vector<8x128xf32>
    %cst_97 = arith.constant 1.000000e+00 : f32
    %245 = vector.broadcast %cst_97 : f32 to vector<8x128xf32>
    %246 = arith.addf %244, %245 : vector<8x128xf32>
    %cst_98 = arith.constant 5.000000e-01 : f32
    %247 = vector.broadcast %cst_98 : f32 to vector<8x128xf32>
    %248 = arith.mulf %247, %246 : vector<8x128xf32>
    %249 = vector.extract_strided_slice %232 {offsets = [0, 256], sizes = [8, 128], strides = [1, 1]} : vector<8x512xf32> to vector<8x128xf32>
    %250 = math.tanh %249 : vector<8x128xf32>
    %251 = vector.extract_strided_slice %232 {offsets = [0, 384], sizes = [8, 128], strides = [1, 1]} : vector<8x512xf32> to vector<8x128xf32>
    %cst_99 = arith.constant 5.000000e-01 : f32
    %252 = vector.broadcast %cst_99 : f32 to vector<8x128xf32>
    %253 = arith.mulf %252, %251 : vector<8x128xf32>
    %254 = math.tanh %253 : vector<8x128xf32>
    %cst_100 = arith.constant 1.000000e+00 : f32
    %255 = vector.broadcast %cst_100 : f32 to vector<8x128xf32>
    %256 = arith.addf %254, %255 : vector<8x128xf32>
    %cst_101 = arith.constant 5.000000e-01 : f32
    %257 = vector.broadcast %cst_101 : f32 to vector<8x128xf32>
    %258 = arith.mulf %257, %256 : vector<8x128xf32>
    %259 = arith.mulf %248, %224 : vector<8x128xf32>
    %260 = arith.mulf %240, %250 : vector<8x128xf32>
    %261 = arith.addf %259, %260 : vector<8x128xf32>
    %262 = math.tanh %261 : vector<8x128xf32>
    %263 = arith.mulf %258, %262 : vector<8x128xf32>
    %c7_i32 = arith.constant 7 : i32
    %c0_102 = arith.constant 0 : index
    %c0_103 = arith.constant 0 : index
    %264 = vector.load %arg3[%c0_102, %c0_103] : memref<128x512xf32, #tpu.memory_space<vmem>>, vector<128x512xf32>
    %265 = arith.index_cast %c7_i32 : i32 to index
    %c0_104 = arith.constant 0 : index
    %c0_105 = arith.constant 0 : index
    %266 = vector.load %arg2[%265, %c0_104, %c0_105] : memref<8x8x512xf32, #tpu.memory_space<vmem>>, vector<1x8x512xf32>
    %267 = vector.shape_cast %266 : vector<1x8x512xf32> to vector<8x512xf32>
    %cst_106 = arith.constant dense<0.000000e+00> : vector<8x512xf32>
    %268 = tpu.matmul %263, %264, %cst_106 {dimension_numbers = #tpu.dot_dimension_numbers<[1], [0], [0], [1], [0, 0, 1, 1], [], []>} : vector<8x128xf32>, vector<128x512xf32>, vector<8x512xf32> -> vector<8x512xf32>
    %269 = arith.addf %267, %268 : vector<8x512xf32>
    %270 = vector.extract_strided_slice %269 {offsets = [0, 0], sizes = [8, 128], strides = [1, 1]} : vector<8x512xf32> to vector<8x128xf32>
    %cst_107 = arith.constant 5.000000e-01 : f32
    %271 = vector.broadcast %cst_107 : f32 to vector<8x128xf32>
    %272 = arith.mulf %271, %270 : vector<8x128xf32>
    %273 = math.tanh %272 : vector<8x128xf32>
    %cst_108 = arith.constant 1.000000e+00 : f32
    %274 = vector.broadcast %cst_108 : f32 to vector<8x128xf32>
    %275 = arith.addf %273, %274 : vector<8x128xf32>
    %cst_109 = arith.constant 5.000000e-01 : f32
    %276 = vector.broadcast %cst_109 : f32 to vector<8x128xf32>
    %277 = arith.mulf %276, %275 : vector<8x128xf32>
    %278 = vector.extract_strided_slice %269 {offsets = [0, 128], sizes = [8, 128], strides = [1, 1]} : vector<8x512xf32> to vector<8x128xf32>
    %cst_110 = arith.constant 5.000000e-01 : f32
    %279 = vector.broadcast %cst_110 : f32 to vector<8x128xf32>
    %280 = arith.mulf %279, %278 : vector<8x128xf32>
    %281 = math.tanh %280 : vector<8x128xf32>
    %cst_111 = arith.constant 1.000000e+00 : f32
    %282 = vector.broadcast %cst_111 : f32 to vector<8x128xf32>
    %283 = arith.addf %281, %282 : vector<8x128xf32>
    %cst_112 = arith.constant 5.000000e-01 : f32
    %284 = vector.broadcast %cst_112 : f32 to vector<8x128xf32>
    %285 = arith.mulf %284, %283 : vector<8x128xf32>
    %286 = vector.extract_strided_slice %269 {offsets = [0, 256], sizes = [8, 128], strides = [1, 1]} : vector<8x512xf32> to vector<8x128xf32>
    %287 = math.tanh %286 : vector<8x128xf32>
    %288 = vector.extract_strided_slice %269 {offsets = [0, 384], sizes = [8, 128], strides = [1, 1]} : vector<8x512xf32> to vector<8x128xf32>
    %cst_113 = arith.constant 5.000000e-01 : f32
    %289 = vector.broadcast %cst_113 : f32 to vector<8x128xf32>
    %290 = arith.mulf %289, %288 : vector<8x128xf32>
    %291 = math.tanh %290 : vector<8x128xf32>
    %cst_114 = arith.constant 1.000000e+00 : f32
    %292 = vector.broadcast %cst_114 : f32 to vector<8x128xf32>
    %293 = arith.addf %291, %292 : vector<8x128xf32>
    %cst_115 = arith.constant 5.000000e-01 : f32
    %294 = vector.broadcast %cst_115 : f32 to vector<8x128xf32>
    %295 = arith.mulf %294, %293 : vector<8x128xf32>
    %296 = arith.mulf %285, %261 : vector<8x128xf32>
    %297 = arith.mulf %277, %287 : vector<8x128xf32>
    %298 = arith.addf %296, %297 : vector<8x128xf32>
    %299 = math.tanh %298 : vector<8x128xf32>
    %300 = arith.mulf %295, %299 : vector<8x128xf32>
    %c8_i32 = arith.constant 8 : i32
    %c0_116 = arith.constant 0 : index
    %c0_117 = arith.constant 0 : index
    %301 = vector.load %arg5[%c0_116, %c0_117] : memref<8x128xf32, #tpu.memory_space<vmem>>, vector<8x128xf32>
    tpu.vector_store %arg5[%c0_116, %c0_117], %300 {strides = array<i32>} : memref<8x128xf32, #tpu.memory_space<vmem>>, vector<8x128xf32>,
    %c0_118 = arith.constant 0 : index
    %c0_119 = arith.constant 0 : index
    %302 = vector.load %arg6[%c0_118, %c0_119] : memref<8x128xf32, #tpu.memory_space<vmem>>, vector<8x128xf32>
    tpu.vector_store %arg6[%c0_118, %c0_119], %298 {strides = array<i32>} : memref<8x128xf32, #tpu.memory_space<vmem>>, vector<8x128xf32>,
    %c0_i32_120 = arith.constant 0 : i32
    %303 = arith.cmpi eq, %arg1, %c0_i32_120 : i32
    %304 = arith.extui %303 : i1 to i32
    %c0_i32_121 = arith.constant 0 : i32
    %305 = arith.cmpi ne, %304, %c0_i32_121 : i32
    scf.if %305 {
      %c0_122 = arith.constant 0 : index
      %c0_123 = arith.constant 0 : index
      %306 = vector.load %arg5[%c0_122, %c0_123] : memref<8x128xf32, #tpu.memory_space<vmem>>, vector<8x128xf32>
      %c0_124 = arith.constant 0 : index
      %c0_125 = arith.constant 0 : index
      %307 = vector.load %arg4[%c0_124, %c0_125] : memref<8x128xf32, #tpu.memory_space<vmem>>, vector<8x128xf32>
      tpu.vector_store %arg4[%c0_124, %c0_125], %306 {strides = array<i32>} : memref<8x128xf32, #tpu.memory_space<vmem>>, vector<8x128xf32>,
    } else {
    }
    return
  }
  func.func @transform_0(%arg0: i32, %arg1: i32) -> (i32, i32, i32) {
    %c0_i32 = arith.constant 0 : i32
    %c0_i32_0 = arith.constant 0 : i32
    return %arg1, %arg0, %c0_i32 : i32, i32, i32
  }
  func.func @transform_1(%arg0: i32, %arg1: i32) -> (i32, i32) {
    %c0_i32 = arith.constant 0 : i32
    %c0_i32_0 = arith.constant 0 : i32
    %c0_i32_1 = arith.constant 0 : i32
    return %c0_i32, %c0_i32_0 : i32, i32
  }
  func.func @transform_2(%arg0: i32, %arg1: i32) -> (i32, i32) {
    %c0_i32 = arith.constant 0 : i32
    %c0_i32_0 = arith.constant 0 : i32
    return %arg0, %c0_i32 : i32, i32
  }
}

</mosaic_0001>

<llo_original>
// kernel: tpu_custom_call.1
$region0: #{tpu_custom_call.1}
  #allocation0 [shape = 'u32[]', space=smem, size = 0x4, offset = 0x4, fixed_abs, tag = 'smem constant byte address 0x4 - core index']
  #allocation1 [shape = 'u32[144,128]{1,0:T(1,128)}', space=vmem, size = 0x12000, scoped, tag = 'internal scratch']
  #allocation2 [shape = 'f32[8,128]{1,0:T(8,128)}', space=vmem, size = 0x1000, scoped, tag = 'scratch operand']
  #allocation3 [shape = 'f32[8,128]{1,0:T(8,128)}', space=vmem, size = 0x1000, scoped, tag = 'scratch operand']
  %s0 = inlined_call_operand.hbm [shape: f32[8,8,512], index: 0, kind: input, shape index: {}]
  %s1 = inlined_call_operand.hbm [shape: f32[128,512], index: 1, kind: input, shape index: {}]
  %s2 = inlined_call_operand.hbm [shape: f32[8,128], index: 2, kind: output, shape index: {}]
  %s3 = sld [smem:[#allocation0]]
  $region34: #{tpu_custom_call.1} parent=0
    _
  %s5 = ssub.s32 1, %s3
  %s6 = scalar_select 0, %s5, %s3
  $region1: #{tpu_custom_call.1} parent=0
    #allocation4 [shape = 'u8[131072]{0}', space=vmem, size = 0x20000, scoped, tag = 'input window, operand 0, single buffered']
    #allocation5 [shape = 's32[1]{0}', space=sflag, size = 0x4, scoped, tag = 'scoped memory for tpu_custom_call.1']
    #allocation6 [shape = 's32[1]{0}', space=sflag, size = 0x4, scoped, tag = 'scoped memory for tpu_custom_call.1']
    #allocation7 [shape = 'u8[262144]{0}', space=vmem, size = 0x40000, scoped, tag = 'input window, operand 1, single buffered']
    #allocation8 [shape = 's32[1]{0}', space=sflag, size = 0x4, scoped, tag = 'scoped memory for tpu_custom_call.1']
    #allocation9 [shape = 'u8[4096]{0}', space=vmem, size = 0x1000, scoped, tag = 'output window, operand 0, single buffered']
    %7 = vsyncpa [#allocation5], 0
    %8 = vsyncpa [#allocation8], 0
    %9 = vsyncpa [#allocation6], 0
    // Predicated region
    $region2: #{tpu_custom_call.1} parent=1 // pred_check
      _
    $region3: #{tpu_custom_call.1} parent=1 // pred_check_branch
      %11 = sbr.rel (0) target = $region5
    $region4: #{tpu_custom_call.1} parent=1 // pred_region
      %s13 = ssub.s32 4096, 4096
      %14 = vsyncadd [#allocation5], %s13
      %s15 = sshll.u32 [#allocation4], 4
      %s16 = int_to_ptr.vmem [resolvable:$true] %s15
      %21 = dma.hbm_to_vmem [thread:$0]  %s0, 4096, %s16, [#allocation5], 512, 512, 32
    $region5: #{tpu_custom_call.1} parent=1 // pred_fallthru
      _
    // Predicated region
    $region6: #{tpu_custom_call.1} parent=1 // pred_check
      _
    $region7: #{tpu_custom_call.1} parent=1 // pred_check_branch
      %23 = sbr.rel (0) target = $region9
    $region8: #{tpu_custom_call.1} parent=1 // pred_region
      %s25 = ssub.s32 8192, 8192
      %26 = vsyncadd [#allocation8], %s25
      %s27 = sshll.u32 [#allocation7], 4
      %s28 = int_to_ptr.vmem [resolvable:$true] %s27
      %33 = dma.hbm_to_vmem [thread:$0]  %s1, 8192, %s28, [#allocation8], 512, 512, 32
    $region9: #{tpu_custom_call.1} parent=1 // pred_fallthru
      _
    // Predicated region
    $region10: #{tpu_custom_call.1} parent=1 // pred_check
      _
    $region11: #{tpu_custom_call.1} parent=1 // pred_check_branch
      %35 = sbr.rel (0) target = $region13
    $region12: #{tpu_custom_call.1} parent=1 // pred_region
      %36 = dma.done [#allocation5], 4096
    $region13: #{tpu_custom_call.1} parent=1 // pred_fallthru
      _
    // Predicated region
    $region14: #{tpu_custom_call.1} parent=1 // pred_check
      _
    $region15: #{tpu_custom_call.1} parent=1 // pred_check_branch
      %38 = sbr.rel (0) target = $region17
    $region16: #{tpu_custom_call.1} parent=1 // pred_region
      %39 = dma.done [#allocation8], 8192
    $region17: #{tpu_custom_call.1} parent=1 // pred_fallthru
      _
    %p40 = scmp.eq.s32.totalorder 0, 0
    // Predicated region
    $region18: #{tpu_custom_call.1} parent=1 // pred_check
      %p41 = pneg %p40
    $region19: #{tpu_custom_call.1} parent=1 // pred_check_branch
      %43 = sbr.rel (%p41) target = $region21
    $region20: #{tpu_custom_call.1} parent=1 // pred_region
      %44 = vst [vmem:[#allocation2] sm:$0xff] 0.0
      %45 = vst [vmem:[#allocation3] sm:$0xff] 0.0
    $region21: #{tpu_custom_call.1} parent=1 // pred_fallthru
      _
    %v46 = vld [vmem:[#allocation2] sm:$0xff]
    %v47 = vld [vmem:[#allocation3] sm:$0xff]
    %v48 = vld [vmem:[#allocation7] sm:$0xff]
    %v49 = vld [vmem:[#allocation7 + $0x8] sm:$0xff]
    %v50 = vld [vmem:[#allocation7 + $0x10] sm:$0xff]
    %v51 = vld [vmem:[#allocation7 + $0x18] sm:$0xff]
    %v52 = vld [vmem:[#allocation7 + $0x20] sm:$0xff]
    %v53 = vld [vmem:[#allocation7 + $0x28] sm:$0xff]
    %v54 = vld [vmem:[#allocation7 + $0x30] sm:$0xff]
    %v55 = vld [vmem:[#allocation7 + $0x38] sm:$0xff]
    %v56 = vld [vmem:[#allocation7 + $0x40] sm:$0xff]
    %v57 = vld [vmem:[#allocation7 + $0x48] sm:$0xff]
    %v58 = vld [vmem:[#allocation7 + $0x50] sm:$0xff]
    %v59 = vld [vmem:[#allocation7 + $0x58] sm:$0xff]
    %v60 = vld [vmem:[#allocation7 + $0x60] sm:$0xff]
    %v61 = vld [vmem:[#allocation7 + $0x68] sm:$0xff]
    %v62 = vld [vmem:[#allocation7 + $0x70] sm:$0xff]
    %v63 = vld [vmem:[#allocation7 + $0x78] sm:$0xff]
    %v64 = vld [vmem:[#allocation7 + $0x80] sm:$0xff]
    %v65 = vld [vmem:[#allocation7 + $0x88] sm:$0xff]
    %v66 = vld [vmem:[#allocation7 + $0x90] sm:$0xff]
    %v67 = vld [vmem:[#allocation7 + $0x98] sm:$0xff]
    %v68 = vld [vmem:[#allocation7 + $0xa0] sm:$0xff]
    %v69 = vld [vmem:[#allocation7 + $0xa8] sm:$0xff]
    %v70 = vld [vmem:[#allocation7 + $0xb0] sm:$0xff]
    %v71 = vld [vmem:[#allocation7 + $0xb8] sm:$0xff]
    %v72 = vld [vmem:[#allocation7 + $0xc0] sm:$0xff]
    %v73 = vld [vmem:[#allocation7 + $0xc8] sm:$0xff]
    %v74 = vld [vmem:[#allocation7 + $0xd0] sm:$0xff]
    %v75 = vld [vmem:[#allocation7 + $0xd8] sm:$0xff]
    %v76 = vld [vmem:[#allocation7 + $0xe0] sm:$0xff]
    %v77 = vld [vmem:[#allocation7 + $0xe8] sm:$0xff]
    %v78 = vld [vmem:[#allocation7 + $0xf0] sm:$0xff]
    %v79 = vld [vmem:[#allocation7 + $0xf8] sm:$0xff]
    %v80 = vld [vmem:[#allocation7 + $0x100] sm:$0xff]
    %v81 = vld [vmem:[#allocation7 + $0x108] sm:$0xff]
    %v82 = vld [vmem:[#allocation7 + $0x110] sm:$0xff]
    %v83 = vld [vmem:[#allocation7 + $0x118] sm:$0xff]
    %v84 = vld [vmem:[#allocation7 + $0x120] sm:$0xff]
    %v85 = vld [vmem:[#allocation7 + $0x128] sm:$0xff]
    %v86 = vld [vmem:[#allocation7 + $0x130] sm:$0xff]
    %v87 = vld [vmem:[#allocation7 + $0x138] sm:$0xff]
    %v88 = vld [vmem:[#allocation7 + $0x140] sm:$0xff]
    %v89 = vld [vmem:[#allocation7 + $0x148] sm:$0xff]
    %v90 = vld [vmem:[#allocation7 + $0x150] sm:$0xff]
    %v91 = vld [vmem:[#allocation7 + $0x158] sm:$0xff]
    %v92 = vld [vmem:[#allocation7 + $0x160] sm:$0xff]
    %v93 = vld [vmem:[#allocation7 + $0x168] sm:$0xff]
    %v94 = vld [vmem:[#allocation7 + $0x170] sm:$0xff]
    %v95 = vld [vmem:[#allocation7 + $0x178] sm:$0xff]
    %v96 = vld [vmem:[#allocation7 + $0x180] sm:$0xff]
    %v97 = vld [vmem:[#allocation7 + $0x188] sm:$0xff]
    %v98 = vld [vmem:[#allocation7 + $0x190] sm:$0xff]
    %v99 = vld [vmem:[#allocation7 + $0x198] sm:$0xff]
    %v100 = vld [vmem:[#allocation7 + $0x1a0] sm:$0xff]
    %v101 = vld [vmem:[#allocation7 + $0x1a8] sm:$0xff]
    %v102 = vld [vmem:[#allocation7 + $0x1b0] sm:$0xff]
    %v103 = vld [vmem:[#allocation7 + $0x1b8] sm:$0xff]
    %v104 = vld [vmem:[#allocation7 + $0x1c0] sm:$0xff]
    %v105 = vld [vmem:[#allocation7 + $0x1c8] sm:$0xff]
    %v106 = vld [vmem:[#allocation7 + $0x1d0] sm:$0xff]
    %v107 = vld [vmem:[#allocation7 + $0x1d8] sm:$0xff]
    %v108 = vld [vmem:[#allocation7 + $0x1e0] sm:$0xff]
    %v109 = vld [vmem:[#allocation7 + $0x1e8] sm:$0xff]
    %v110 = vld [vmem:[#allocation7 + $0x1f0] sm:$0xff]
    %v111 = vld [vmem:[#allocation7 + $0x1f8] sm:$0xff]
    %v112 = vld [vmem:[#allocation4] sm:$0xff]
    %v113 = vld [vmem:[#allocation4 + $0x8] sm:$0xff]
    %v114 = vld [vmem:[#allocation4 + $0x10] sm:$0xff]
    %v115 = vld [vmem:[#allocation4 + $0x18] sm:$0xff]
    %116 = vmatprep.subr.mxu0 %v49
    %117 = vmatpush1.msra.mxu0 %v48
    %118 = vmatprep.subr.mxu0 %v53
    %119 = vmatpush1.msra.mxu0 %v52
    %120 = vmatprep.subr.mxu0 %v57
    %121 = vmatpush1.msra.mxu0 %v56
    %122 = vmatprep.subr.mxu0 %v61
    %123 = vmatpush1.msra.mxu0 %v60
    %124 = vmatprep.subr.mxu0 %v65
    %125 = vmatpush1.msra.mxu0 %v64
    %126 = vmatprep.subr.mxu0 %v69
    %127 = vmatpush1.msra.mxu0 %v68
    %128 = vmatprep.subr.mxu0 %v73
    %129 = vmatpush1.msra.mxu0 %v72
    %130 = vmatprep.subr.mxu0 %v77
    %131 = vmatpush1.msra.mxu0 %v76
    %132 = vmatprep.subr.mxu0 %v81
    %133 = vmatpush1.msra.mxu0 %v80
    %134 = vmatprep.subr.mxu0 %v85
    %135 = vmatpush1.msra.mxu0 %v84
    %136 = vmatprep.subr.mxu0 %v89
    %137 = vmatpush1.msra.mxu0 %v88
    %138 = vmatprep.subr.mxu0 %v93
    %139 = vmatpush1.msra.mxu0 %v92
    %140 = vmatprep.subr.mxu0 %v97
    %141 = vmatpush1.msra.mxu0 %v96
    %142 = vmatprep.subr.mxu0 %v101
    %143 = vmatpush1.msra.mxu0 %v100
    %144 = vmatprep.subr.mxu0 %v105
    %145 = vmatpush1.msra.mxu0 %v104
    %146 = vmatprep.subr.mxu0 %v109
    %147 = vmatpush1.msra.mxu0 %v108
    %148 = vmatprep.subr.mxu0 0.0
    %149 = vmatpush1.msra.mxu0 0.0
    %150 = vmatprep.subr.mxu0 0.0
    %151 = vmatpush1.msra.mxu0 0.0
    %152 = vmatprep.subr.mxu0 0.0
    %153 = vmatpush1.msra.mxu0 0.0
    %154 = vmatprep.subr.mxu0 0.0
    %155 = vmatpush1.msra.mxu0 0.0
    %156 = vmatprep.subr.mxu0 0.0
    %157 = vmatpush1.msra.mxu0 0.0
    %158 = vmatprep.subr.mxu0 0.0
    %159 = vmatpush1.msra.mxu0 0.0
    %160 = vmatprep.subr.mxu0 0.0
    %161 = vmatpush1.msra.mxu0 0.0
    %162 = vmatprep.subr.mxu0 0.0
    %163 = vmatpush1.msra.mxu0 0.0
    %164 = vmatprep.subr.mxu0 0.0
    %165 = vmatpush1.msra.mxu0 0.0
    %166 = vmatprep.subr.mxu0 0.0
    %167 = vmatpush1.msra.mxu0 0.0
    %168 = vmatprep.subr.mxu0 0.0
    %169 = vmatpush1.msra.mxu0 0.0
    %170 = vmatprep.subr.mxu0 0.0
    %171 = vmatpush1.msra.mxu0 0.0
    %172 = vmatprep.subr.mxu0 0.0
    %173 = vmatpush1.msra.mxu0 0.0
    %174 = vmatprep.subr.mxu0 0.0
    %175 = vmatpush1.msra.mxu0 0.0
    %176 = vmatprep.subr.mxu0 0.0
    %177 = vmatpush1.msra.mxu0 0.0
    %178 = vmatprep.subr.mxu0 0.0
    %179 = vmatpush1.msra.mxu0 0.0
    %180 = vmatprep.mubr.f32.mxu0 0.0
    %181 = vmatmul.mubr.f32.gmra.mrb[0].mxu0 %v46
    %v182 = vpop.f32.mrb[0].mxu0
    %v183 = vadd.f32 0.0, %v182
    %v184 = vpop.f32.mrb[0].mxu0
    %v185 = vadd.f32 0.0, %v184
    %186 = vdwg.mxu0
    %187 = vmatprep.subr.mxu0 %v51
    %188 = vmatpush1.msra.mxu0 %v50
    %189 = vmatprep.subr.mxu0 %v55
    %190 = vmatpush1.msra.mxu0 %v54
    %191 = vmatprep.subr.mxu0 %v59
    %192 = vmatpush1.msra.mxu0 %v58
    %193 = vmatprep.subr.mxu0 %v63
    %194 = vmatpush1.msra.mxu0 %v62
    %195 = vmatprep.subr.mxu0 %v67
    %196 = vmatpush1.msra.mxu0 %v66
    %197 = vmatprep.subr.mxu0 %v71
    %198 = vmatpush1.msra.mxu0 %v70
    %199 = vmatprep.subr.mxu0 %v75
    %200 = vmatpush1.msra.mxu0 %v74
    %201 = vmatprep.subr.mxu0 %v79
    %202 = vmatpush1.msra.mxu0 %v78
    %203 = vmatprep.subr.mxu0 %v83
    %204 = vmatpush1.msra.mxu0 %v82
    %205 = vmatprep.subr.mxu0 %v87
    %206 = vmatpush1.msra.mxu0 %v86
    %207 = vmatprep.subr.mxu0 %v91
    %208 = vmatpush1.msra.mxu0 %v90
    %209 = vmatprep.subr.mxu0 %v95
    %210 = vmatpush1.msra.mxu0 %v94
    %211 = vmatprep.subr.mxu0 %v99
    %212 = vmatpush1.msra.mxu0 %v98
    %213 = vmatprep.subr.mxu0 %v103
    %214 = vmatpush1.msra.mxu0 %v102
    %215 = vmatprep.subr.mxu0 %v107
    %216 = vmatpush1.msra.mxu0 %v106
    %217 = vmatprep.subr.mxu0 %v111
    %218 = vmatpush1.msra.mxu0 %v110
    %219 = vmatprep.subr.mxu0 0.0
    %220 = vmatpush1.msra.mxu0 0.0
    %221 = vmatprep.subr.mxu0 0.0
    %222 = vmatpush1.msra.mxu0 0.0
    %223 = vmatprep.subr.mxu0 0.0
    %224 = vmatpush1.msra.mxu0 0.0
    %225 = vmatprep.subr.mxu0 0.0
    %226 = vmatpush1.msra.mxu0 0.0
    %227 = vmatprep.subr.mxu0 0.0
    %228 = vmatpush1.msra.mxu0 0.0
    %229 = vmatprep.subr.mxu0 0.0
    %230 = vmatpush1.msra.mxu0 0.0
    %231 = vmatprep.subr.mxu0 0.0
    %232 = vmatpush1.msra.mxu0 0.0
    %233 = vmatprep.subr.mxu0 0.0
    %234 = vmatpush1.msra.mxu0 0.0
    %235 = vmatprep.subr.mxu0 0.0
    %236 = vmatpush1.msra.mxu0 0.0
    %237 = vmatprep.subr.mxu0 0.0
    %238 = vmatpush1.msra.mxu0 0.0
    %239 = vmatprep.subr.mxu0 0.0
    %240 = vmatpush1.msra.mxu0 0.0
    %241 = vmatprep.subr.mxu0 0.0
    %242 = vmatpush1.msra.mxu0 0.0
    %243 = vmatprep.subr.mxu0 0.0
    %244 = vmatpush1.msra.mxu0 0.0
    %245 = vmatprep.subr.mxu0 0.0
    %246 = vmatpush1.msra.mxu0 0.0
    %247 = vmatprep.subr.mxu0 0.0
    %248 = vmatpush1.msra.mxu0 0.0
    %249 = vmatprep.subr.mxu0 0.0
    %250 = vmatpush1.msra.mxu0 0.0
    %251 = vmatprep.mubr.f32.mxu0 0.0
    %252 = vmatmul.mubr.f32.gmra.mrb[0].mxu0 %v46
    %v253 = vpop.f32.mrb[0].mxu0
    %v254 = vadd.f32 0.0, %v253
    %v255 = vpop.f32.mrb[0].mxu0
    %v256 = vadd.f32 0.0, %v255
    %257 = vdwg.mxu0
    %v258 = vadd.f32 %v112, %v183
    %v259 = vadd.f32 %v113, %v185
    %v260 = vadd.f32 %v114, %v254
    %v261 = vadd.f32 %v115, %v256
    %v262 = vmul.f32 %v258, 0.5
    %v263 = vtanh.pop %v262
    %v264 = vadd.f32 %v263, 1.0
    %v265 = vmul.f32 %v264, 0.5
    %v266 = vmul.f32 %v259, 0.5
    %v267 = vtanh.pop %v266
    %v268 = vadd.f32 %v267, 1.0
    %v269 = vmul.f32 %v268, 0.5
    %v270 = vtanh.pop %v260
    %v271 = vmul.f32 %v261, 0.5
    %v272 = vtanh.pop %v271
    %v273 = vadd.f32 %v272, 1.0
    %v274 = vmul.f32 %v273, 0.5
    %v275 = vmul.f32 %v269, %v47
    %v276 = vmul.f32 %v265, %v270
    %v277 = vadd.f32 %v275, %v276
    %v278 = vtanh.pop %v277
    %v279 = vmul.f32 %v274, %v278
    %s280 = scalar_lea.vmem [#allocation4], 32
    %v281 = vld [vmem:[%s280] sm:$0xff]
    %v282 = vld [vmem:[%s280 + $0x8] sm:$0xff]
    %v283 = vld [vmem:[%s280 + $0x10] sm:$0xff]
    %v284 = vld [vmem:[%s280 + $0x18] sm:$0xff]
    %285 = vmatprep.subr.mxu0 %v49
    %286 = vmatpush1.msra.mxu0 %v48
    %287 = vmatprep.subr.mxu0 %v53
    %288 = vmatpush1.msra.mxu0 %v52
    %289 = vmatprep.subr.mxu0 %v57
    %290 = vmatpush1.msra.mxu0 %v56
    %291 = vmatprep.subr.mxu0 %v61
    %292 = vmatpush1.msra.mxu0 %v60
    %293 = vmatprep.subr.mxu0 %v65
    %294 = vmatpush1.msra.mxu0 %v64
    %295 = vmatprep.subr.mxu0 %v69
    %296 = vmatpush1.msra.mxu0 %v68
    %297 = vmatprep.subr.mxu0 %v73
    %298 = vmatpush1.msra.mxu0 %v72
    %299 = vmatprep.subr.mxu0 %v77
    %300 = vmatpush1.msra.mxu0 %v76
    %301 = vmatprep.subr.mxu0 %v81
    %302 = vmatpush1.msra.mxu0 %v80
    %303 = vmatprep.subr.mxu0 %v85
    %304 = vmatpush1.msra.mxu0 %v84
    %305 = vmatprep.subr.mxu0 %v89
    %306 = vmatpush1.msra.mxu0 %v88
    %307 = vmatprep.subr.mxu0 %v93
    %308 = vmatpush1.msra.mxu0 %v92
    %309 = vmatprep.subr.mxu0 %v97
    %310 = vmatpush1.msra.mxu0 %v96
    %311 = vmatprep.subr.mxu0 %v101
    %312 = vmatpush1.msra.mxu0 %v100
    %313 = vmatprep.subr.mxu0 %v105
    %314 = vmatpush1.msra.mxu0 %v104
    %315 = vmatprep.subr.mxu0 %v109
    %316 = vmatpush1.msra.mxu0 %v108
    %317 = vmatprep.subr.mxu0 0.0
    %318 = vmatpush1.msra.mxu0 0.0
    %319 = vmatprep.subr.mxu0 0.0
    %320 = vmatpush1.msra.mxu0 0.0
    %321 = vmatprep.subr.mxu0 0.0
    %322 = vmatpush1.msra.mxu0 0.0
    %323 = vmatprep.subr.mxu0 0.0
    %324 = vmatpush1.msra.mxu0 0.0
    %325 = vmatprep.subr.mxu0 0.0
    %326 = vmatpush1.msra.mxu0 0.0
    %327 = vmatprep.subr.mxu0 0.0
    %328 = vmatpush1.msra.mxu0 0.0
    %329 = vmatprep.subr.mxu0 0.0
    %330 = vmatpush1.msra.mxu0 0.0
    %331 = vmatprep.subr.mxu0 0.0
    %332 = vmatpush1.msra.mxu0 0.0
    %333 = vmatprep.subr.mxu0 0.0
    %334 = vmatpush1.msra.mxu0 0.0
    %335 = vmatprep.subr.mxu0 0.0
    %336 = vmatpush1.msra.mxu0 0.0
    %337 = vmatprep.subr.mxu0 0.0
    %338 = vmatpush1.msra.mxu0 0.0
    %339 = vmatprep.subr.mxu0 0.0
    %340 = vmatpush1.msra.mxu0 0.0
    %341 = vmatprep.subr.mxu0 0.0
    %342 = vmatpush1.msra.mxu0 0.0
    %343 = vmatprep.subr.mxu0 0.0
    %344 = vmatpush1.msra.mxu0 0.0
    %345 = vmatprep.subr.mxu0 0.0
    %346 = vmatpush1.msra.mxu0 0.0
    %347 = vmatprep.subr.mxu0 0.0
    %348 = vmatpush1.msra.mxu0 0.0
    %349 = vmatprep.mubr.f32.mxu0 0.0
    %350 = vmatmul.mubr.f32.gmra.mrb[0].mxu0 %v279
    %v351 = vpop.f32.mrb[0].mxu0
    %v352 = vadd.f32 0.0, %v351
    %v353 = vpop.f32.mrb[0].mxu0
    %v354 = vadd.f32 0.0, %v353
    %355 = vdwg.mxu0
    %356 = vmatprep.subr.mxu0 %v51
    %357 = vmatpush1.msra.mxu0 %v50
    %358 = vmatprep.subr.mxu0 %v55
    %359 = vmatpush1.msra.mxu0 %v54
    %360 = vmatprep.subr.mxu0 %v59
    %361 = vmatpush1.msra.mxu0 %v58
    %362 = vmatprep.subr.mxu0 %v63
    %363 = vmatpush1.msra.mxu0 %v62
    %364 = vmatprep.subr.mxu0 %v67
    %365 = vmatpush1.msra.mxu0 %v66
    %366 = vmatprep.subr.mxu0 %v71
    %367 = vmatpush1.msra.mxu0 %v70
    %368 = vmatprep.subr.mxu0 %v75
    %369 = vmatpush1.msra.mxu0 %v74
    %370 = vmatprep.subr.mxu0 %v79
    %371 = vmatpush1.msra.mxu0 %v78
    %372 = vmatprep.subr.mxu0 %v83
    %373 = vmatpush1.msra.mxu0 %v82
    %374 = vmatprep.subr.mxu0 %v87
    %375 = vmatpush1.msra.mxu0 %v86
    %376 = vmatprep.subr.mxu0 %v91
    %377 = vmatpush1.msra.mxu0 %v90
    %378 = vmatprep.subr.mxu0 %v95
    %379 = vmatpush1.msra.mxu0 %v94
    %380 = vmatprep.subr.mxu0 %v99
    %381 = vmatpush1.msra.mxu0 %v98
    %382 = vmatprep.subr.mxu0 %v103
    %383 = vmatpush1.msra.mxu0 %v102
    %384 = vmatprep.subr.mxu0 %v107
    %385 = vmatpush1.msra.mxu0 %v106
    %386 = vmatprep.subr.mxu0 %v111
    %387 = vmatpush1.msra.mxu0 %v110
    %388 = vmatprep.subr.mxu0 0.0
    %389 = vmatpush1.msra.mxu0 0.0
    %390 = vmatprep.subr.mxu0 0.0
    %391 = vmatpush1.msra.mxu0 0.0
    %392 = vmatprep.subr.mxu0 0.0
    %393 = vmatpush1.msra.mxu0 0.0
    %394 = vmatprep.subr.mxu0 0.0
    %395 = vmatpush1.msra.mxu0 0.0
    %396 = vmatprep.subr.mxu0 0.0
    %397 = vmatpush1.msra.mxu0 0.0
    %398 = vmatprep.subr.mxu0 0.0
    %399 = vmatpush1.msra.mxu0 0.0
    %400 = vmatprep.subr.mxu0 0.0
    %401 = vmatpush1.msra.mxu0 0.0
    %402 = vmatprep.subr.mxu0 0.0
    %403 = vmatpush1.msra.mxu0 0.0
    %404 = vmatprep.subr.mxu0 0.0
    %405 = vmatpush1.msra.mxu0 0.0
    %406 = vmatprep.subr.mxu0 0.0
    %407 = vmatpush1.msra.mxu0 0.0
    %408 = vmatprep.subr.mxu0 0.0
    %409 = vmatpush1.msra.mxu0 0.0
    %410 = vmatprep.subr.mxu0 0.0
    %411 = vmatpush1.msra.mxu0 0.0
    %412 = vmatprep.subr.mxu0 0.0
    %413 = vmatpush1.msra.mxu0 0.0
    %414 = vmatprep.subr.mxu0 0.0
    %415 = vmatpush1.msra.mxu0 0.0
    %416 = vmatprep.subr.mxu0 0.0
    %417 = vmatpush1.msra.mxu0 0.0
    %418 = vmatprep.subr.mxu0 0.0
    %419 = vmatpush1.msra.mxu0 0.0
    %420 = vmatprep.mubr.f32.mxu0 0.0
    %421 = vmatmul.mubr.f32.gmra.mrb[0].mxu0 %v279
    %v422 = vpop.f32.mrb[0].mxu0
    %v423 = vadd.f32 0.0, %v422
    %v424 = vpop.f32.mrb[0].mxu0
    %v425 = vadd.f32 0.0, %v424
    %426 = vdwg.mxu0
    %v427 = vadd.f32 %v281, %v352
    %v428 = vadd.f32 %v282, %v354
    %v429 = vadd.f32 %v283, %v423
    %v430 = vadd.f32 %v284, %v425
    %v431 = vmul.f32 %v427, 0.5
    %v432 = vtanh.pop %v431
    %v433 = vadd.f32 %v432, 1.0
    %v434 = vmul.f32 %v433, 0.5
    %v435 = vmul.f32 %v428, 0.5
    %v436 = vtanh.pop %v435
    %v437 = vadd.f32 %v436, 1.0
    %v438 = vmul.f32 %v437, 0.5
    %v439 = vtanh.pop %v429
    %v440 = vmul.f32 %v430, 0.5
    %v441 = vtanh.pop %v440
    %v442 = vadd.f32 %v441, 1.0
    %v443 = vmul.f32 %v442, 0.5
    %v444 = vmul.f32 %v438, %v277
    %v445 = vmul.f32 %v434, %v439
    %v446 = vadd.f32 %v444, %v445
    %v447 = vtanh.pop %v446
    %v448 = vmul.f32 %v443, %v447
    %s449 = scalar_lea.vmem [#allocation4], 64
    %v450 = vld [vmem:[%s449] sm:$0xff]
    %v451 = vld [vmem:[%s449 + $0x8] sm:$0xff]
    %v452 = vld [vmem:[%s449 + $0x10] sm:$0xff]
    %v453 = vld [vmem:[%s449 + $0x18] sm:$0xff]
    %454 = vmatprep.subr.mxu0 %v49
    %455 = vmatpush1.msra.mxu0 %v48
    %456 = vmatprep.subr.mxu0 %v53
    %457 = vmatpush1.msra.mxu0 %v52
    %458 = vmatprep.subr.mxu0 %v57
    %459 = vmatpush1.msra.mxu0 %v56
    %460 = vmatprep.subr.mxu0 %v61
    %461 = vmatpush1.msra.mxu0 %v60
    %462 = vmatprep.subr.mxu0 %v65
    %463 = vmatpush1.msra.mxu0 %v64
    %464 = vmatprep.subr.mxu0 %v69
    %465 = vmatpush1.msra.mxu0 %v68
    %466 = vmatprep.subr.mxu0 %v73
    %467 = vmatpush1.msra.mxu0 %v72
    %468 = vmatprep.subr.mxu0 %v77
    %469 = vmatpush1.msra.mxu0 %v76
    %470 = vmatprep.subr.mxu0 %v81
    %471 = vmatpush1.msra.mxu0 %v80
    %472 = vmatprep.subr.mxu0 %v85
    %473 = vmatpush1.msra.mxu0 %v84
    %474 = vmatprep.subr.mxu0 %v89
    %475 = vmatpush1.msra.mxu0 %v88
    %476 = vmatprep.subr.mxu0 %v93
    %477 = vmatpush1.msra.mxu0 %v92
    %478 = vmatprep.subr.mxu0 %v97
    %479 = vmatpush1.msra.mxu0 %v96
    %480 = vmatprep.subr.mxu0 %v101
    %481 = vmatpush1.msra.mxu0 %v100
    %482 = vmatprep.subr.mxu0 %v105
    %483 = vmatpush1.msra.mxu0 %v104
    %484 = vmatprep.subr.mxu0 %v109
    %485 = vmatpush1.msra.mxu0 %v108
    %486 = vmatprep.subr.mxu0 0.0
    %487 = vmatpush1.msra.mxu0 0.0
    %488 = vmatprep.subr.mxu0 0.0
    %489 = vmatpush1.msra.mxu0 0.0
    %490 = vmatprep.subr.mxu0 0.0
    %491 = vmatpush1.msra.mxu0 0.0
    %492 = vmatprep.subr.mxu0 0.0
    %493 = vmatpush1.msra.mxu0 0.0
    %494 = vmatprep.subr.mxu0 0.0
    %495 = vmatpush1.msra.mxu0 0.0
    %496 = vmatprep.subr.mxu0 0.0
    %497 = vmatpush1.msra.mxu0 0.0
    %498 = vmatprep.subr.mxu0 0.0
    %499 = vmatpush1.msra.mxu0 0.0
    %500 = vmatprep.subr.mxu0 0.0
    %501 = vmatpush1.msra.mxu0 0.0
    %502 = vmatprep.subr.mxu0 0.0
    %503 = vmatpush1.msra.mxu0 0.0
    %504 = vmatprep.subr.mxu0 0.0
    %505 = vmatpush1.msra.mxu0 0.0
    %506 = vmatprep.subr.mxu0 0.0
    %507 = vmatpush1.msra.mxu0 0.0
    %508 = vmatprep.subr.mxu0 0.0
    %509 = vmatpush1.msra.mxu0 0.0
    %510 = vmatprep.subr.mxu0 0.0
    %511 = vmatpush1.msra.mxu0 0.0
    %512 = vmatprep.subr.mxu0 0.0
    %513 = vmatpush1.msra.mxu0 0.0
    %514 = vmatprep.subr.mxu0 0.0
    %515 = vmatpush1.msra.mxu0 0.0
    %516 = vmatprep.subr.mxu0 0.0
    %517 = vmatpush1.msra.mxu0 0.0
    %518 = vmatprep.mubr.f32.mxu0 0.0
    %519 = vmatmul.mubr.f32.gmra.mrb[0].mxu0 %v448
    %v520 = vpop.f32.mrb[0].mxu0
    %v521 = vadd.f32 0.0, %v520
    %v522 = vpop.f32.mrb[0].mxu0
    %v523 = vadd.f32 0.0, %v522
    %524 = vdwg.mxu0
    %525 = vmatprep.subr.mxu0 %v51
    %526 = vmatpush1.msra.mxu0 %v50
    %527 = vmatprep.subr.mxu0 %v55
    %528 = vmatpush1.msra.mxu0 %v54
    %529 = vmatprep.subr.mxu0 %v59
    %530 = vmatpush1.msra.mxu0 %v58
    %531 = vmatprep.subr.mxu0 %v63
    %532 = vmatpush1.msra.mxu0 %v62
    %533 = vmatprep.subr.mxu0 %v67
    %534 = vmatpush1.msra.mxu0 %v66
    %535 = vmatprep.subr.mxu0 %v71
    %536 = vmatpush1.msra.mxu0 %v70
    %537 = vmatprep.subr.mxu0 %v75
    %538 = vmatpush1.msra.mxu0 %v74
    %539 = vmatprep.subr.mxu0 %v79
    %540 = vmatpush1.msra.mxu0 %v78
    %541 = vmatprep.subr.mxu0 %v83
    %542 = vmatpush1.msra.mxu0 %v82
    %543 = vmatprep.subr.mxu0 %v87
    %544 = vmatpush1.msra.mxu0 %v86
    %545 = vmatprep.subr.mxu0 %v91
    %546 = vmatpush1.msra.mxu0 %v90
    %547 = vmatprep.subr.mxu0 %v95
    %548 = vmatpush1.msra.mxu0 %v94
    %549 = vmatprep.subr.mxu0 %v99
    %550 = vmatpush1.msra.mxu0 %v98
    %551 = vmatprep.subr.mxu0 %v103
    %552 = vmatpush1.msra.mxu0 %v102
    %553 = vmatprep.subr.mxu0 %v107
    %554 = vmatpush1.msra.mxu0 %v106
    %555 = vmatprep.subr.mxu0 %v111
    %556 = vmatpush1.msra.mxu0 %v110
    %557 = vmatprep.subr.mxu0 0.0
    %558 = vmatpush1.msra.mxu0 0.0
    %559 = vmatprep.subr.mxu0 0.0
    %560 = vmatpush1.msra.mxu0 0.0
    %561 = vmatprep.subr.mxu0 0.0
    %562 = vmatpush1.msra.mxu0 0.0
    %563 = vmatprep.subr.mxu0 0.0
    %564 = vmatpush1.msra.mxu0 0.0
    %565 = vmatprep.subr.mxu0 0.0
    %566 = vmatpush1.msra.mxu0 0.0
    %567 = vmatprep.subr.mxu0 0.0
    %568 = vmatpush1.msra.mxu0 0.0
    %569 = vmatprep.subr.mxu0 0.0
    %570 = vmatpush1.msra.mxu0 0.0
    %571 = vmatprep.subr.mxu0 0.0
    %572 = vmatpush1.msra.mxu0 0.0
    %573 = vmatprep.subr.mxu0 0.0
    %574 = vmatpush1.msra.mxu0 0.0
    %575 = vmatprep.subr.mxu0 0.0
    %576 = vmatpush1.msra.mxu0 0.0
    %577 = vmatprep.subr.mxu0 0.0
    %578 = vmatpush1.msra.mxu0 0.0
    %579 = vmatprep.subr.mxu0 0.0
    %580 = vmatpush1.msra.mxu0 0.0
    %581 = vmatprep.subr.mxu0 0.0
    %582 = vmatpush1.msra.mxu0 0.0
    %583 = vmatprep.subr.mxu0 0.0
    %584 = vmatpush1.msra.mxu0 0.0
    %585 = vmatprep.subr.mxu0 0.0
    %586 = vmatpush1.msra.mxu0 0.0
    %587 = vmatprep.subr.mxu0 0.0
    %588 = vmatpush1.msra.mxu0 0.0
    %589 = vmatprep.mubr.f32.mxu0 0.0
    %590 = vmatmul.mubr.f32.gmra.mrb[0].mxu0 %v448
    %v591 = vpop.f32.mrb[0].mxu0
    %v592 = vadd.f32 0.0, %v591
    %v593 = vpop.f32.mrb[0].mxu0
    %v594 = vadd.f32 0.0, %v593
    %595 = vdwg.mxu0
    %v596 = vadd.f32 %v450, %v521
    %v597 = vadd.f32 %v451, %v523
    %v598 = vadd.f32 %v452, %v592
    %v599 = vadd.f32 %v453, %v594
    %v600 = vmul.f32 %v596, 0.5
    %v601 = vtanh.pop %v600
    %v602 = vadd.f32 %v601, 1.0
    %v603 = vmul.f32 %v602, 0.5
    %v604 = vmul.f32 %v597, 0.5
    %v605 = vtanh.pop %v604
    %v606 = vadd.f32 %v605, 1.0
    %v607 = vmul.f32 %v606, 0.5
    %v608 = vtanh.pop %v598
    %v609 = vmul.f32 %v599, 0.5
    %v610 = vtanh.pop %v609
    %v611 = vadd.f32 %v610, 1.0
    %v612 = vmul.f32 %v611, 0.5
    %v613 = vmul.f32 %v607, %v446
    %v614 = vmul.f32 %v603, %v608
    %v615 = vadd.f32 %v613, %v614
    %v616 = vtanh.pop %v615
    %v617 = vmul.f32 %v612, %v616
    %s618 = scalar_lea.vmem [#allocation4], 96
    %v619 = vld [vmem:[%s618] sm:$0xff]
    %v620 = vld [vmem:[%s618 + $0x8] sm:$0xff]
    %v621 = vld [vmem:[%s618 + $0x10] sm:$0xff]
    %v622 = vld [vmem:[%s618 + $0x18] sm:$0xff]
    %623 = vmatprep.subr.mxu0 %v49
    %624 = vmatpush1.msra.mxu0 %v48
    %625 = vmatprep.subr.mxu0 %v53
    %626 = vmatpush1.msra.mxu0 %v52
    %627 = vmatprep.subr.mxu0 %v57
    %628 = vmatpush1.msra.mxu0 %v56
    %629 = vmatprep.subr.mxu0 %v61
    %630 = vmatpush1.msra.mxu0 %v60
    %631 = vmatprep.subr.mxu0 %v65
    %632 = vmatpush1.msra.mxu0 %v64
    %633 = vmatprep.subr.mxu0 %v69
    %634 = vmatpush1.msra.mxu0 %v68
    %635 = vmatprep.subr.mxu0 %v73
    %636 = vmatpush1.msra.mxu0 %v72
    %637 = vmatprep.subr.mxu0 %v77
    %638 = vmatpush1.msra.mxu0 %v76
    %639 = vmatprep.subr.mxu0 %v81
    %640 = vmatpush1.msra.mxu0 %v80
    %641 = vmatprep.subr.mxu0 %v85
    %642 = vmatpush1.msra.mxu0 %v84
    %643 = vmatprep.subr.mxu0 %v89
    %644 = vmatpush1.msra.mxu0 %v88
    %645 = vmatprep.subr.mxu0 %v93
    %646 = vmatpush1.msra.mxu0 %v92
    %647 = vmatprep.subr.mxu0 %v97
    %648 = vmatpush1.msra.mxu0 %v96
    %649 = vmatprep.subr.mxu0 %v101
    %650 = vmatpush1.msra.mxu0 %v100
    %651 = vmatprep.subr.mxu0 %v105
    %652 = vmatpush1.msra.mxu0 %v104
    %653 = vmatprep.subr.mxu0 %v109
    %654 = vmatpush1.msra.mxu0 %v108
    %655 = vmatprep.subr.mxu0 0.0
    %656 = vmatpush1.msra.mxu0 0.0
    %657 = vmatprep.subr.mxu0 0.0
    %658 = vmatpush1.msra.mxu0 0.0
    %659 = vmatprep.subr.mxu0 0.0
    %660 = vmatpush1.msra.mxu0 0.0
    %661 = vmatprep.subr.mxu0 0.0
    %662 = vmatpush1.msra.mxu0 0.0
    %663 = vmatprep.subr.mxu0 0.0
    %664 = vmatpush1.msra.mxu0 0.0
    %665 = vmatprep.subr.mxu0 0.0
    %666 = vmatpush1.msra.mxu0 0.0
    %667 = vmatprep.subr.mxu0 0.0
    %668 = vmatpush1.msra.mxu0 0.0
    %669 = vmatprep.subr.mxu0 0.0
    %670 = vmatpush1.msra.mxu0 0.0
    %671 = vmatprep.subr.mxu0 0.0
    %672 = vmatpush1.msra.mxu0 0.0
    %673 = vmatprep.subr.mxu0 0.0
    %674 = vmatpush1.msra.mxu0 0.0
    %675 = vmatprep.subr.mxu0 0.0
    %676 = vmatpush1.msra.mxu0 0.0
    %677 = vmatprep.subr.mxu0 0.0
    %678 = vmatpush1.msra.mxu0 0.0
    %679 = vmatprep.subr.mxu0 0.0
    %680 = vmatpush1.msra.mxu0 0.0
    %681 = vmatprep.subr.mxu0 0.0
    %682 = vmatpush1.msra.mxu0 0.0
    %683 = vmatprep.subr.mxu0 0.0
    %684 = vmatpush1.msra.mxu0 0.0
    %685 = vmatprep.subr.mxu0 0.0
    %686 = vmatpush1.msra.mxu0 0.0
    %687 = vmatprep.mubr.f32.mxu0 0.0
    %688 = vmatmul.mubr.f32.gmra.mrb[0].mxu0 %v617
    %v689 = vpop.f32.mrb[0].mxu0
    %v690 = vadd.f32 0.0, %v689
    %v691 = vpop.f32.mrb[0].mxu0
    %v692 = vadd.f32 0.0, %v691
    %693 = vdwg.mxu0
    %694 = vmatprep.subr.mxu0 %v51
    %695 = vmatpush1.msra.mxu0 %v50
    %696 = vmatprep.subr.mxu0 %v55
    %697 = vmatpush1.msra.mxu0 %v54
    %698 = vmatprep.subr.mxu0 %v59
    %699 = vmatpush1.msra.mxu0 %v58
    %700 = vmatprep.subr.mxu0 %v63
    %701 = vmatpush1.msra.mxu0 %v62
    %702 = vmatprep.subr.mxu0 %v67
    %703 = vmatpush1.msra.mxu0 %v66
    %704 = vmatprep.subr.mxu0 %v71
    %705 = vmatpush1.msra.mxu0 %v70
    %706 = vmatprep.subr.mxu0 %v75
    %707 = vmatpush1.msra.mxu0 %v74
    %708 = vmatprep.subr.mxu0 %v79
    %709 = vmatpush1.msra.mxu0 %v78
    %710 = vmatprep.subr.mxu0 %v83
    %711 = vmatpush1.msra.mxu0 %v82
    %712 = vmatprep.subr.mxu0 %v87
    %713 = vmatpush1.msra.mxu0 %v86
    %714 = vmatprep.subr.mxu0 %v91
    %715 = vmatpush1.msra.mxu0 %v90
    %716 = vmatprep.subr.mxu0 %v95
    %717 = vmatpush1.msra.mxu0 %v94
    %718 = vmatprep.subr.mxu0 %v99
    %719 = vmatpush1.msra.mxu0 %v98
    %720 = vmatprep.subr.mxu0 %v103
    %721 = vmatpush1.msra.mxu0 %v102
    %722 = vmatprep.subr.mxu0 %v107
    %723 = vmatpush1.msra.mxu0 %v106
    %724 = vmatprep.subr.mxu0 %v111
    %725 = vmatpush1.msra.mxu0 %v110
    %726 = vmatprep.subr.mxu0 0.0
    %727 = vmatpush1.msra.mxu0 0.0
    %728 = vmatprep.subr.mxu0 0.0
    %729 = vmatpush1.msra.mxu0 0.0
    %730 = vmatprep.subr.mxu0 0.0
    %731 = vmatpush1.msra.mxu0 0.0
    %732 = vmatprep.subr.mxu0 0.0
    %733 = vmatpush1.msra.mxu0 0.0
    %734 = vmatprep.subr.mxu0 0.0
    %735 = vmatpush1.msra.mxu0 0.0
    %736 = vmatprep.subr.mxu0 0.0
    %737 = vmatpush1.msra.mxu0 0.0
    %738 = vmatprep.subr.mxu0 0.0
    %739 = vmatpush1.msra.mxu0 0.0
    %740 = vmatprep.subr.mxu0 0.0
    %741 = vmatpush1.msra.mxu0 0.0
    %742 = vmatprep.subr.mxu0 0.0
    %743 = vmatpush1.msra.mxu0 0.0
    %744 = vmatprep.subr.mxu0 0.0
    %745 = vmatpush1.msra.mxu0 0.0
    %746 = vmatprep.subr.mxu0 0.0
    %747 = vmatpush1.msra.mxu0 0.0
    %748 = vmatprep.subr.mxu0 0.0
    %749 = vmatpush1.msra.mxu0 0.0
    %750 = vmatprep.subr.mxu0 0.0
    %751 = vmatpush1.msra.mxu0 0.0
    %752 = vmatprep.subr.mxu0 0.0
    %753 = vmatpush1.msra.mxu0 0.0
    %754 = vmatprep.subr.mxu0 0.0
    %755 = vmatpush1.msra.mxu0 0.0
    %756 = vmatprep.subr.mxu0 0.0
    %757 = vmatpush1.msra.mxu0 0.0
    %758 = vmatprep.mubr.f32.mxu0 0.0
    %759 = vmatmul.mubr.f32.gmra.mrb[0].mxu0 %v617
    %v760 = vpop.f32.mrb[0].mxu0
    %v761 = vadd.f32 0.0, %v760
    %v762 = vpop.f32.mrb[0].mxu0
    %v763 = vadd.f32 0.0, %v762
    %764 = vdwg.mxu0
    %v765 = vadd.f32 %v619, %v690
    %v766 = vadd.f32 %v620, %v692
    %v767 = vadd.f32 %v621, %v761
    %v768 = vadd.f32 %v622, %v763
    %v769 = vmul.f32 %v765, 0.5
    %v770 = vtanh.pop %v769
    %v771 = vadd.f32 %v770, 1.0
    %v772 = vmul.f32 %v771, 0.5
    %v773 = vmul.f32 %v766, 0.5
    %v774 = vtanh.pop %v773
    %v775 = vadd.f32 %v774, 1.0
    %v776 = vmul.f32 %v775, 0.5
    %v777 = vtanh.pop %v767
    %v778 = vmul.f32 %v768, 0.5
    %v779 = vtanh.pop %v778
    %v780 = vadd.f32 %v779, 1.0
    %v781 = vmul.f32 %v780, 0.5
    %v782 = vmul.f32 %v776, %v615
    %v783 = vmul.f32 %v772, %v777
    %v784 = vadd.f32 %v782, %v783
    %v785 = vtanh.pop %v784
    %v786 = vmul.f32 %v781, %v785
    %s787 = scalar_lea.vmem [#allocation4], 128
    %v788 = vld [vmem:[%s787] sm:$0xff]
    %v789 = vld [vmem:[%s787 + $0x8] sm:$0xff]
    %v790 = vld [vmem:[%s787 + $0x10] sm:$0xff]
    %v791 = vld [vmem:[%s787 + $0x18] sm:$0xff]
    %792 = vmatprep.subr.mxu0 %v49
    %793 = vmatpush1.msra.mxu0 %v48
    %794 = vmatprep.subr.mxu0 %v53
    %795 = vmatpush1.msra.mxu0 %v52
    %796 = vmatprep.subr.mxu0 %v57
    %797 = vmatpush1.msra.mxu0 %v56
    %798 = vmatprep.subr.mxu0 %v61
    %799 = vmatpush1.msra.mxu0 %v60
    %800 = vmatprep.subr.mxu0 %v65
    %801 = vmatpush1.msra.mxu0 %v64
    %802 = vmatprep.subr.mxu0 %v69
    %803 = vmatpush1.msra.mxu0 %v68
    %804 = vmatprep.subr.mxu0 %v73
    %805 = vmatpush1.msra.mxu0 %v72
    %806 = vmatprep.subr.mxu0 %v77
    %807 = vmatpush1.msra.mxu0 %v76
    %808 = vmatprep.subr.mxu0 %v81
    %809 = vmatpush1.msra.mxu0 %v80
    %810 = vmatprep.subr.mxu0 %v85
    %811 = vmatpush1.msra.mxu0 %v84
    %812 = vmatprep.subr.mxu0 %v89
    %813 = vmatpush1.msra.mxu0 %v88
    %814 = vmatprep.subr.mxu0 %v93
    %815 = vmatpush1.msra.mxu0 %v92
    %816 = vmatprep.subr.mxu0 %v97
    %817 = vmatpush1.msra.mxu0 %v96
    %818 = vmatprep.subr.mxu0 %v101
    %819 = vmatpush1.msra.mxu0 %v100
    %820 = vmatprep.subr.mxu0 %v105
    %821 = vmatpush1.msra.mxu0 %v104
    %822 = vmatprep.subr.mxu0 %v109
    %823 = vmatpush1.msra.mxu0 %v108
    %824 = vmatprep.subr.mxu0 0.0
    %825 = vmatpush1.msra.mxu0 0.0
    %826 = vmatprep.subr.mxu0 0.0
    %827 = vmatpush1.msra.mxu0 0.0
    %828 = vmatprep.subr.mxu0 0.0
    %829 = vmatpush1.msra.mxu0 0.0
    %830 = vmatprep.subr.mxu0 0.0
    %831 = vmatpush1.msra.mxu0 0.0
    %832 = vmatprep.subr.mxu0 0.0
    %833 = vmatpush1.msra.mxu0 0.0
    %834 = vmatprep.subr.mxu0 0.0
    %835 = vmatpush1.msra.mxu0 0.0
    %836 = vmatprep.subr.mxu0 0.0
    %837 = vmatpush1.msra.mxu0 0.0
    %838 = vmatprep.subr.mxu0 0.0
    %839 = vmatpush1.msra.mxu0 0.0
    %840 = vmatprep.subr.mxu0 0.0
    %841 = vmatpush1.msra.mxu0 0.0
    %842 = vmatprep.subr.mxu0 0.0
    %843 = vmatpush1.msra.mxu0 0.0
    %844 = vmatprep.subr.mxu0 0.0
    %845 = vmatpush1.msra.mxu0 0.0
    %846 = vmatprep.subr.mxu0 0.0
    %847 = vmatpush1.msra.mxu0 0.0
    %848 = vmatprep.subr.mxu0 0.0
    %849 = vmatpush1.msra.mxu0 0.0
    %850 = vmatprep.subr.mxu0 0.0
    %851 = vmatpush1.msra.mxu0 0.0
    %852 = vmatprep.subr.mxu0 0.0
    %853 = vmatpush1.msra.mxu0 0.0
    %854 = vmatprep.subr.mxu0 0.0
    %855 = vmatpush1.msra.mxu0 0.0
    %856 = vmatprep.mubr.f32.mxu0 0.0
    %857 = vmatmul.mubr.f32.gmra.mrb[0].mxu0 %v786
    %v858 = vpop.f32.mrb[0].mxu0
    %v859 = vadd.f32 0.0, %v858
    %v860 = vpop.f32.mrb[0].mxu0
    %v861 = vadd.f32 0.0, %v860
    %862 = vdwg.mxu0
    %863 = vmatprep.subr.mxu0 %v51
    %864 = vmatpush1.msra.mxu0 %v50
    %865 = vmatprep.subr.mxu0 %v55
    %866 = vmatpush1.msra.mxu0 %v54
    %867 = vmatprep.subr.mxu0 %v59
    %868 = vmatpush1.msra.mxu0 %v58
    %869 = vmatprep.subr.mxu0 %v63
    %870 = vmatpush1.msra.mxu0 %v62
    %871 = vmatprep.subr.mxu0 %v67
    %872 = vmatpush1.msra.mxu0 %v66
    %873 = vmatprep.subr.mxu0 %v71
    %874 = vmatpush1.msra.mxu0 %v70
    %875 = vmatprep.subr.mxu0 %v75
    %876 = vmatpush1.msra.mxu0 %v74
    %877 = vmatprep.subr.mxu0 %v79
    %878 = vmatpush1.msra.mxu0 %v78
    %879 = vmatprep.subr.mxu0 %v83
    %880 = vmatpush1.msra.mxu0 %v82
    %881 = vmatprep.subr.mxu0 %v87
    %882 = vmatpush1.msra.mxu0 %v86
    %883 = vmatprep.subr.mxu0 %v91
    %884 = vmatpush1.msra.mxu0 %v90
    %885 = vmatprep.subr.mxu0 %v95
    %886 = vmatpush1.msra.mxu0 %v94
    %887 = vmatprep.subr.mxu0 %v99
    %888 = vmatpush1.msra.mxu0 %v98
    %889 = vmatprep.subr.mxu0 %v103
    %890 = vmatpush1.msra.mxu0 %v102
    %891 = vmatprep.subr.mxu0 %v107
    %892 = vmatpush1.msra.mxu0 %v106
    %893 = vmatprep.subr.mxu0 %v111
    %894 = vmatpush1.msra.mxu0 %v110
    %895 = vmatprep.subr.mxu0 0.0
    %896 = vmatpush1.msra.mxu0 0.0
    %897 = vmatprep.subr.mxu0 0.0
    %898 = vmatpush1.msra.mxu0 0.0
    %899 = vmatprep.subr.mxu0 0.0
    %900 = vmatpush1.msra.mxu0 0.0
    %901 = vmatprep.subr.mxu0 0.0
    %902 = vmatpush1.msra.mxu0 0.0
    %903 = vmatprep.subr.mxu0 0.0
    %904 = vmatpush1.msra.mxu0 0.0
    %905 = vmatprep.subr.mxu0 0.0
    %906 = vmatpush1.msra.mxu0 0.0
    %907 = vmatprep.subr.mxu0 0.0
    %908 = vmatpush1.msra.mxu0 0.0
    %909 = vmatprep.subr.mxu0 0.0
    %910 = vmatpush1.msra.mxu0 0.0
    %911 = vmatprep.subr.mxu0 0.0
    %912 = vmatpush1.msra.mxu0 0.0
    %913 = vmatprep.subr.mxu0 0.0
    %914 = vmatpush1.msra.mxu0 0.0
    %915 = vmatprep.subr.mxu0 0.0
    %916 = vmatpush1.msra.mxu0 0.0
    %917 = vmatprep.subr.mxu0 0.0
    %918 = vmatpush1.msra.mxu0 0.0
    %919 = vmatprep.subr.mxu0 0.0
    %920 = vmatpush1.msra.mxu0 0.0
    %921 = vmatprep.subr.mxu0 0.0
    %922 = vmatpush1.msra.mxu0 0.0
    %923 = vmatprep.subr.mxu0 0.0
    %924 = vmatpush1.msra.mxu0 0.0
    %925 = vmatprep.subr.mxu0 0.0
    %926 = vmatpush1.msra.mxu0 0.0
    %927 = vmatprep.mubr.f32.mxu0 0.0
    %928 = vmatmul.mubr.f32.gmra.mrb[0].mxu0 %v786
    %v929 = vpop.f32.mrb[0].mxu0
    %v930 = vadd.f32 0.0, %v929
    %v931 = vpop.f32.mrb[0].mxu0
    %v932 = vadd.f32 0.0, %v931
    %933 = vdwg.mxu0
    %v934 = vadd.f32 %v788, %v859
    %v935 = vadd.f32 %v789, %v861
    %v936 = vadd.f32 %v790, %v930
    %v937 = vadd.f32 %v791, %v932
    %v938 = vmul.f32 %v934, 0.5
    %v939 = vtanh.pop %v938
    %v940 = vadd.f32 %v939, 1.0
    %v941 = vmul.f32 %v940, 0.5
    %v942 = vmul.f32 %v935, 0.5
    %v943 = vtanh.pop %v942
    %v944 = vadd.f32 %v943, 1.0
    %v945 = vmul.f32 %v944, 0.5
    %v946 = vtanh.pop %v936
    %v947 = vmul.f32 %v937, 0.5
    %v948 = vtanh.pop %v947
    %v949 = vadd.f32 %v948, 1.0
    %v950 = vmul.f32 %v949, 0.5
    %v951 = vmul.f32 %v945, %v784
    %v952 = vmul.f32 %v941, %v946
    %v953 = vadd.f32 %v951, %v952
    %v954 = vtanh.pop %v953
    %v955 = vmul.f32 %v950, %v954
    %s956 = scalar_lea.vmem [#allocation4], 160
    %v957 = vld [vmem:[%s956] sm:$0xff]
    %v958 = vld [vmem:[%s956 + $0x8] sm:$0xff]
    %v959 = vld [vmem:[%s956 + $0x10] sm:$0xff]
    %v960 = vld [vmem:[%s956 + $0x18] sm:$0xff]
    %961 = vmatprep.subr.mxu0 %v49
    %962 = vmatpush1.msra.mxu0 %v48
    %963 = vmatprep.subr.mxu0 %v53
    %964 = vmatpush1.msra.mxu0 %v52
    %965 = vmatprep.subr.mxu0 %v57
    %966 = vmatpush1.msra.mxu0 %v56
    %967 = vmatprep.subr.mxu0 %v61
    %968 = vmatpush1.msra.mxu0 %v60
    %969 = vmatprep.subr.mxu0 %v65
    %970 = vmatpush1.msra.mxu0 %v64
    %971 = vmatprep.subr.mxu0 %v69
    %972 = vmatpush1.msra.mxu0 %v68
    %973 = vmatprep.subr.mxu0 %v73
    %974 = vmatpush1.msra.mxu0 %v72
    %975 = vmatprep.subr.mxu0 %v77
    %976 = vmatpush1.msra.mxu0 %v76
    %977 = vmatprep.subr.mxu0 %v81
    %978 = vmatpush1.msra.mxu0 %v80
    %979 = vmatprep.subr.mxu0 %v85
    %980 = vmatpush1.msra.mxu0 %v84
    %981 = vmatprep.subr.mxu0 %v89
    %982 = vmatpush1.msra.mxu0 %v88
    %983 = vmatprep.subr.mxu0 %v93
    %984 = vmatpush1.msra.mxu0 %v92
    %985 = vmatprep.subr.mxu0 %v97
    %986 = vmatpush1.msra.mxu0 %v96
    %987 = vmatprep.subr.mxu0 %v101
    %988 = vmatpush1.msra.mxu0 %v100
    %989 = vmatprep.subr.mxu0 %v105
    %990 = vmatpush1.msra.mxu0 %v104
    %991 = vmatprep.subr.mxu0 %v109
    %992 = vmatpush1.msra.mxu0 %v108
    %993 = vmatprep.subr.mxu0 0.0
    %994 = vmatpush1.msra.mxu0 0.0
    %995 = vmatprep.subr.mxu0 0.0
    %996 = vmatpush1.msra.mxu0 0.0
    %997 = vmatprep.subr.mxu0 0.0
    %998 = vmatpush1.msra.mxu0 0.0
    %999 = vmatprep.subr.mxu0 0.0
    %1000 = vmatpush1.msra.mxu0 0.0
    %1001 = vmatprep.subr.mxu0 0.0
    %1002 = vmatpush1.msra.mxu0 0.0
    %1003 = vmatprep.subr.mxu0 0.0
    %1004 = vmatpush1.msra.mxu0 0.0
    %1005 = vmatprep.subr.mxu0 0.0
    %1006 = vmatpush1.msra.mxu0 0.0
    %1007 = vmatprep.subr.mxu0 0.0
    %1008 = vmatpush1.msra.mxu0 0.0
    %1009 = vmatprep.subr.mxu0 0.0
    %1010 = vmatpush1.msra.mxu0 0.0
    %1011 = vmatprep.subr.mxu0 0.0
    %1012 = vmatpush1.msra.mxu0 0.0
    %1013 = vmatprep.subr.mxu0 0.0
    %1014 = vmatpush1.msra.mxu0 0.0
    %1015 = vmatprep.subr.mxu0 0.0
    %1016 = vmatpush1.msra.mxu0 0.0
    %1017 = vmatprep.subr.mxu0 0.0
    %1018 = vmatpush1.msra.mxu0 0.0
    %1019 = vmatprep.subr.mxu0 0.0
    %1020 = vmatpush1.msra.mxu0 0.0
    %1021 = vmatprep.subr.mxu0 0.0
    %1022 = vmatpush1.msra.mxu0 0.0
    %1023 = vmatprep.subr.mxu0 0.0
    %1024 = vmatpush1.msra.mxu0 0.0
    %1025 = vmatprep.mubr.f32.mxu0 0.0
    %1026 = vmatmul.mubr.f32.gmra.mrb[0].mxu0 %v955
    %v1027 = vpop.f32.mrb[0].mxu0
    %v1028 = vadd.f32 0.0, %v1027
    %v1029 = vpop.f32.mrb[0].mxu0
    %v1030 = vadd.f32 0.0, %v1029
    %1031 = vdwg.mxu0
    %1032 = vmatprep.subr.mxu0 %v51
    %1033 = vmatpush1.msra.mxu0 %v50
    %1034 = vmatprep.subr.mxu0 %v55
    %1035 = vmatpush1.msra.mxu0 %v54
    %1036 = vmatprep.subr.mxu0 %v59
    %1037 = vmatpush1.msra.mxu0 %v58
    %1038 = vmatprep.subr.mxu0 %v63
    %1039 = vmatpush1.msra.mxu0 %v62
    %1040 = vmatprep.subr.mxu0 %v67
    %1041 = vmatpush1.msra.mxu0 %v66
    %1042 = vmatprep.subr.mxu0 %v71
    %1043 = vmatpush1.msra.mxu0 %v70
    %1044 = vmatprep.subr.mxu0 %v75
    %1045 = vmatpush1.msra.mxu0 %v74
    %1046 = vmatprep.subr.mxu0 %v79
    %1047 = vmatpush1.msra.mxu0 %v78
    %1048 = vmatprep.subr.mxu0 %v83
    %1049 = vmatpush1.msra.mxu0 %v82
    %1050 = vmatprep.subr.mxu0 %v87
    %1051 = vmatpush1.msra.mxu0 %v86
    %1052 = vmatprep.subr.mxu0 %v91
    %1053 = vmatpush1.msra.mxu0 %v90
    %1054 = vmatprep.subr.mxu0 %v95
    %1055 = vmatpush1.msra.mxu0 %v94
    %1056 = vmatprep.subr.mxu0 %v99
    %1057 = vmatpush1.msra.mxu0 %v98
    %1058 = vmatprep.subr.mxu0 %v103
    %1059 = vmatpush1.msra.mxu0 %v102
    %1060 = vmatprep.subr.mxu0 %v107
    %1061 = vmatpush1.msra.mxu0 %v106
    %1062 = vmatprep.subr.mxu0 %v111
    %1063 = vmatpush1.msra.mxu0 %v110
    %1064 = vmatprep.subr.mxu0 0.0
    %1065 = vmatpush1.msra.mxu0 0.0
    %1066 = vmatprep.subr.mxu0 0.0
    %1067 = vmatpush1.msra.mxu0 0.0
    %1068 = vmatprep.subr.mxu0 0.0
    %1069 = vmatpush1.msra.mxu0 0.0
    %1070 = vmatprep.subr.mxu0 0.0
    %1071 = vmatpush1.msra.mxu0 0.0
    %1072 = vmatprep.subr.mxu0 0.0
    %1073 = vmatpush1.msra.mxu0 0.0
    %1074 = vmatprep.subr.mxu0 0.0
    %1075 = vmatpush1.msra.mxu0 0.0
    %1076 = vmatprep.subr.mxu0 0.0
    %1077 = vmatpush1.msra.mxu0 0.0
    %1078 = vmatprep.subr.mxu0 0.0
    %1079 = vmatpush1.msra.mxu0 0.0
    %1080 = vmatprep.subr.mxu0 0.0
    %1081 = vmatpush1.msra.mxu0 0.0
    %1082 = vmatprep.subr.mxu0 0.0
    %1083 = vmatpush1.msra.mxu0 0.0
    %1084 = vmatprep.subr.mxu0 0.0
    %1085 = vmatpush1.msra.mxu0 0.0
    %1086 = vmatprep.subr.mxu0 0.0
    %1087 = vmatpush1.msra.mxu0 0.0
    %1088 = vmatprep.subr.mxu0 0.0
    %1089 = vmatpush1.msra.mxu0 0.0
    %1090 = vmatprep.subr.mxu0 0.0
    %1091 = vmatpush1.msra.mxu0 0.0
    %1092 = vmatprep.subr.mxu0 0.0
    %1093 = vmatpush1.msra.mxu0 0.0
    %1094 = vmatprep.subr.mxu0 0.0
    %1095 = vmatpush1.msra.mxu0 0.0
    %1096 = vmatprep.mubr.f32.mxu0 0.0
    %1097 = vmatmul.mubr.f32.gmra.mrb[0].mxu0 %v955
    %v1098 = vpop.f32.mrb[0].mxu0
    %v1099 = vadd.f32 0.0, %v1098
    %v1100 = vpop.f32.mrb[0].mxu0
    %v1101 = vadd.f32 0.0, %v1100
    %1102 = vdwg.mxu0
    %v1103 = vadd.f32 %v957, %v1028
    %v1104 = vadd.f32 %v958, %v1030
    %v1105 = vadd.f32 %v959, %v1099
    %v1106 = vadd.f32 %v960, %v1101
    %v1107 = vmul.f32 %v1103, 0.5
    %v1108 = vtanh.pop %v1107
    %v1109 = vadd.f32 %v1108, 1.0
    %v1110 = vmul.f32 %v1109, 0.5
    %v1111 = vmul.f32 %v1104, 0.5
    %v1112 = vtanh.pop %v1111
    %v1113 = vadd.f32 %v1112, 1.0
    %v1114 = vmul.f32 %v1113, 0.5
    %v1115 = vtanh.pop %v1105
    %v1116 = vmul.f32 %v1106, 0.5
    %v1117 = vtanh.pop %v1116
    %v1118 = vadd.f32 %v1117, 1.0
    %v1119 = vmul.f32 %v1118, 0.5
    %v1120 = vmul.f32 %v1114, %v953
    %v1121 = vmul.f32 %v1110, %v1115
    %v1122 = vadd.f32 %v1120, %v1121
    %v1123 = vtanh.pop %v1122
    %v1124 = vmul.f32 %v1119, %v1123
    %s1125 = scalar_lea.vmem [#allocation4], 192
    %v1126 = vld [vmem:[%s1125] sm:$0xff]
    %v1127 = vld [vmem:[%s1125 + $0x8] sm:$0xff]
    %v1128 = vld [vmem:[%s1125 + $0x10] sm:$0xff]
    %v1129 = vld [vmem:[%s1125 + $0x18] sm:$0xff]
    %1130 = vmatprep.subr.mxu0 %v49
    %1131 = vmatpush1.msra.mxu0 %v48
    %1132 = vmatprep.subr.mxu0 %v53
    %1133 = vmatpush1.msra.mxu0 %v52
    %1134 = vmatprep.subr.mxu0 %v57
    %1135 = vmatpush1.msra.mxu0 %v56
    %1136 = vmatprep.subr.mxu0 %v61
    %1137 = vmatpush1.msra.mxu0 %v60
    %1138 = vmatprep.subr.mxu0 %v65
    %1139 = vmatpush1.msra.mxu0 %v64
    %1140 = vmatprep.subr.mxu0 %v69
    %1141 = vmatpush1.msra.mxu0 %v68
    %1142 = vmatprep.subr.mxu0 %v73
    %1143 = vmatpush1.msra.mxu0 %v72
    %1144 = vmatprep.subr.mxu0 %v77
    %1145 = vmatpush1.msra.mxu0 %v76
    %1146 = vmatprep.subr.mxu0 %v81
    %1147 = vmatpush1.msra.mxu0 %v80
    %1148 = vmatprep.subr.mxu0 %v85
    %1149 = vmatpush1.msra.mxu0 %v84
    %1150 = vmatprep.subr.mxu0 %v89
    %1151 = vmatpush1.msra.mxu0 %v88
    %1152 = vmatprep.subr.mxu0 %v93
    %1153 = vmatpush1.msra.mxu0 %v92
    %1154 = vmatprep.subr.mxu0 %v97
    %1155 = vmatpush1.msra.mxu0 %v96
    %1156 = vmatprep.subr.mxu0 %v101
    %1157 = vmatpush1.msra.mxu0 %v100
    %1158 = vmatprep.subr.mxu0 %v105
    %1159 = vmatpush1.msra.mxu0 %v104
    %1160 = vmatprep.subr.mxu0 %v109
    %1161 = vmatpush1.msra.mxu0 %v108
    %1162 = vmatprep.subr.mxu0 0.0
    %1163 = vmatpush1.msra.mxu0 0.0
    %1164 = vmatprep.subr.mxu0 0.0
    %1165 = vmatpush1.msra.mxu0 0.0
    %1166 = vmatprep.subr.mxu0 0.0
    %1167 = vmatpush1.msra.mxu0 0.0
    %1168 = vmatprep.subr.mxu0 0.0
    %1169 = vmatpush1.msra.mxu0 0.0
    %1170 = vmatprep.subr.mxu0 0.0
    %1171 = vmatpush1.msra.mxu0 0.0
    %1172 = vmatprep.subr.mxu0 0.0
    %1173 = vmatpush1.msra.mxu0 0.0
    %1174 = vmatprep.subr.mxu0 0.0
    %1175 = vmatpush1.msra.mxu0 0.0
    %1176 = vmatprep.subr.mxu0 0.0
    %1177 = vmatpush1.msra.mxu0 0.0
    %1178 = vmatprep.subr.mxu0 0.0
    %1179 = vmatpush1.msra.mxu0 0.0
    %1180 = vmatprep.subr.mxu0 0.0
    %1181 = vmatpush1.msra.mxu0 0.0
    %1182 = vmatprep.subr.mxu0 0.0
    %1183 = vmatpush1.msra.mxu0 0.0
    %1184 = vmatprep.subr.mxu0 0.0
    %1185 = vmatpush1.msra.mxu0 0.0
    %1186 = vmatprep.subr.mxu0 0.0
    %1187 = vmatpush1.msra.mxu0 0.0
    %1188 = vmatprep.subr.mxu0 0.0
    %1189 = vmatpush1.msra.mxu0 0.0
    %1190 = vmatprep.subr.mxu0 0.0
    %1191 = vmatpush1.msra.mxu0 0.0
    %1192 = vmatprep.subr.mxu0 0.0
    %1193 = vmatpush1.msra.mxu0 0.0
    %1194 = vmatprep.mubr.f32.mxu0 0.0
    %1195 = vmatmul.mubr.f32.gmra.mrb[0].mxu0 %v1124
    %v1196 = vpop.f32.mrb[0].mxu0
    %v1197 = vadd.f32 0.0, %v1196
    %v1198 = vpop.f32.mrb[0].mxu0
    %v1199 = vadd.f32 0.0, %v1198
    %1200 = vdwg.mxu0
    %1201 = vmatprep.subr.mxu0 %v51
    %1202 = vmatpush1.msra.mxu0 %v50
    %1203 = vmatprep.subr.mxu0 %v55
    %1204 = vmatpush1.msra.mxu0 %v54
    %1205 = vmatprep.subr.mxu0 %v59
    %1206 = vmatpush1.msra.mxu0 %v58
    %1207 = vmatprep.subr.mxu0 %v63
    %1208 = vmatpush1.msra.mxu0 %v62
    %1209 = vmatprep.subr.mxu0 %v67
    %1210 = vmatpush1.msra.mxu0 %v66
    %1211 = vmatprep.subr.mxu0 %v71
    %1212 = vmatpush1.msra.mxu0 %v70
    %1213 = vmatprep.subr.mxu0 %v75
    %1214 = vmatpush1.msra.mxu0 %v74
    %1215 = vmatprep.subr.mxu0 %v79
    %1216 = vmatpush1.msra.mxu0 %v78
    %1217 = vmatprep.subr.mxu0 %v83
    %1218 = vmatpush1.msra.mxu0 %v82
    %1219 = vmatprep.subr.mxu0 %v87
    %1220 = vmatpush1.msra.mxu0 %v86
    %1221 = vmatprep.subr.mxu0 %v91
    %1222 = vmatpush1.msra.mxu0 %v90
    %1223 = vmatprep.subr.mxu0 %v95
    %1224 = vmatpush1.msra.mxu0 %v94
    %1225 = vmatprep.subr.mxu0 %v99
    %1226 = vmatpush1.msra.mxu0 %v98
    %1227 = vmatprep.subr.mxu0 %v103
    %1228 = vmatpush1.msra.mxu0 %v102
    %1229 = vmatprep.subr.mxu0 %v107
    %1230 = vmatpush1.msra.mxu0 %v106
    %1231 = vmatprep.subr.mxu0 %v111
    %1232 = vmatpush1.msra.mxu0 %v110
    %1233 = vmatprep.subr.mxu0 0.0
    %1234 = vmatpush1.msra.mxu0 0.0
    %1235 = vmatprep.subr.mxu0 0.0
    %1236 = vmatpush1.msra.mxu0 0.0
    %1237 = vmatprep.subr.mxu0 0.0
    %1238 = vmatpush1.msra.mxu0 0.0
    %1239 = vmatprep.subr.mxu0 0.0
    %1240 = vmatpush1.msra.mxu0 0.0
    %1241 = vmatprep.subr.mxu0 0.0
    %1242 = vmatpush1.msra.mxu0 0.0
    %1243 = vmatprep.subr.mxu0 0.0
    %1244 = vmatpush1.msra.mxu0 0.0
    %1245 = vmatprep.subr.mxu0 0.0
    %1246 = vmatpush1.msra.mxu0 0.0
    %1247 = vmatprep.subr.mxu0 0.0
    %1248 = vmatpush1.msra.mxu0 0.0
    %1249 = vmatprep.subr.mxu0 0.0
    %1250 = vmatpush1.msra.mxu0 0.0
    %1251 = vmatprep.subr.mxu0 0.0
    %1252 = vmatpush1.msra.mxu0 0.0
    %1253 = vmatprep.subr.mxu0 0.0
    %1254 = vmatpush1.msra.mxu0 0.0
    %1255 = vmatprep.subr.mxu0 0.0
    %1256 = vmatpush1.msra.mxu0 0.0
    %1257 = vmatprep.subr.mxu0 0.0
    %1258 = vmatpush1.msra.mxu0 0.0
    %1259 = vmatprep.subr.mxu0 0.0
    %1260 = vmatpush1.msra.mxu0 0.0
    %1261 = vmatprep.subr.mxu0 0.0
    %1262 = vmatpush1.msra.mxu0 0.0
    %1263 = vmatprep.subr.mxu0 0.0
    %1264 = vmatpush1.msra.mxu0 0.0
    %1265 = vmatprep.mubr.f32.mxu0 0.0
    %1266 = vmatmul.mubr.f32.gmra.mrb[0].mxu0 %v1124
    %v1267 = vpop.f32.mrb[0].mxu0
    %v1268 = vadd.f32 0.0, %v1267
    %v1269 = vpop.f32.mrb[0].mxu0
    %v1270 = vadd.f32 0.0, %v1269
    %1271 = vdwg.mxu0
    %v1272 = vadd.f32 %v1126, %v1197
    %v1273 = vadd.f32 %v1127, %v1199
    %v1274 = vadd.f32 %v1128, %v1268
    %v1275 = vadd.f32 %v1129, %v1270
    %v1276 = vmul.f32 %v1272, 0.5
    %v1277 = vtanh.pop %v1276
    %v1278 = vadd.f32 %v1277, 1.0
    %v1279 = vmul.f32 %v1278, 0.5
    %v1280 = vmul.f32 %v1273, 0.5
    %v1281 = vtanh.pop %v1280
    %v1282 = vadd.f32 %v1281, 1.0
    %v1283 = vmul.f32 %v1282, 0.5
    %v1284 = vtanh.pop %v1274
    %v1285 = vmul.f32 %v1275, 0.5
    %v1286 = vtanh.pop %v1285
    %v1287 = vadd.f32 %v1286, 1.0
    %v1288 = vmul.f32 %v1287, 0.5
    %v1289 = vmul.f32 %v1283, %v1122
    %v1290 = vmul.f32 %v1279, %v1284
    %v1291 = vadd.f32 %v1289, %v1290
    %v1292 = vtanh.pop %v1291
    %v1293 = vmul.f32 %v1288, %v1292
    %s1294 = scalar_lea.vmem [#allocation4], 224
    %v1295 = vld [vmem:[%s1294] sm:$0xff]
    %v1296 = vld [vmem:[%s1294 + $0x8] sm:$0xff]
    %v1297 = vld [vmem:[%s1294 + $0x10] sm:$0xff]
    %v1298 = vld [vmem:[%s1294 + $0x18] sm:$0xff]
    %1299 = vmatprep.subr.mxu0 %v49
    %1300 = vmatpush1.msra.mxu0 %v48
    %1301 = vmatprep.subr.mxu0 %v53
    %1302 = vmatpush1.msra.mxu0 %v52
    %1303 = vmatprep.subr.mxu0 %v57
    %1304 = vmatpush1.msra.mxu0 %v56
    %1305 = vmatprep.subr.mxu0 %v61
    %1306 = vmatpush1.msra.mxu0 %v60
    %1307 = vmatprep.subr.mxu0 %v65
    %1308 = vmatpush1.msra.mxu0 %v64
    %1309 = vmatprep.subr.mxu0 %v69
    %1310 = vmatpush1.msra.mxu0 %v68
    %1311 = vmatprep.subr.mxu0 %v73
    %1312 = vmatpush1.msra.mxu0 %v72
    %1313 = vmatprep.subr.mxu0 %v77
    %1314 = vmatpush1.msra.mxu0 %v76
    %1315 = vmatprep.subr.mxu0 %v81
    %1316 = vmatpush1.msra.mxu0 %v80
    %1317 = vmatprep.subr.mxu0 %v85
    %1318 = vmatpush1.msra.mxu0 %v84
    %1319 = vmatprep.subr.mxu0 %v89
    %1320 = vmatpush1.msra.mxu0 %v88
    %1321 = vmatprep.subr.mxu0 %v93
    %1322 = vmatpush1.msra.mxu0 %v92
    %1323 = vmatprep.subr.mxu0 %v97
    %1324 = vmatpush1.msra.mxu0 %v96
    %1325 = vmatprep.subr.mxu0 %v101
    %1326 = vmatpush1.msra.mxu0 %v100
    %1327 = vmatprep.subr.mxu0 %v105
    %1328 = vmatpush1.msra.mxu0 %v104
    %1329 = vmatprep.subr.mxu0 %v109
    %1330 = vmatpush1.msra.mxu0 %v108
    %1331 = vmatprep.subr.mxu0 0.0
    %1332 = vmatpush1.msra.mxu0 0.0
    %1333 = vmatprep.subr.mxu0 0.0
    %1334 = vmatpush1.msra.mxu0 0.0
    %1335 = vmatprep.subr.mxu0 0.0
    %1336 = vmatpush1.msra.mxu0 0.0
    %1337 = vmatprep.subr.mxu0 0.0
    %1338 = vmatpush1.msra.mxu0 0.0
    %1339 = vmatprep.subr.mxu0 0.0
    %1340 = vmatpush1.msra.mxu0 0.0
    %1341 = vmatprep.subr.mxu0 0.0
    %1342 = vmatpush1.msra.mxu0 0.0
    %1343 = vmatprep.subr.mxu0 0.0
    %1344 = vmatpush1.msra.mxu0 0.0
    %1345 = vmatprep.subr.mxu0 0.0
    %1346 = vmatpush1.msra.mxu0 0.0
    %1347 = vmatprep.subr.mxu0 0.0
    %1348 = vmatpush1.msra.mxu0 0.0
    %1349 = vmatprep.subr.mxu0 0.0
    %1350 = vmatpush1.msra.mxu0 0.0
    %1351 = vmatprep.subr.mxu0 0.0
    %1352 = vmatpush1.msra.mxu0 0.0
    %1353 = vmatprep.subr.mxu0 0.0
    %1354 = vmatpush1.msra.mxu0 0.0
    %1355 = vmatprep.subr.mxu0 0.0
    %1356 = vmatpush1.msra.mxu0 0.0
    %1357 = vmatprep.subr.mxu0 0.0
    %1358 = vmatpush1.msra.mxu0 0.0
    %1359 = vmatprep.subr.mxu0 0.0
    %1360 = vmatpush1.msra.mxu0 0.0
    %1361 = vmatprep.subr.mxu0 0.0
    %1362 = vmatpush1.msra.mxu0 0.0
    %1363 = vmatprep.mubr.f32.mxu0 0.0
    %1364 = vmatmul.mubr.f32.gmra.mrb[0].mxu0 %v1293
    %v1365 = vpop.f32.mrb[0].mxu0
    %v1366 = vadd.f32 0.0, %v1365
    %v1367 = vpop.f32.mrb[0].mxu0
    %v1368 = vadd.f32 0.0, %v1367
    %1369 = vdwg.mxu0
    %1370 = vmatprep.subr.mxu0 %v51
    %1371 = vmatpush1.msra.mxu0 %v50
    %1372 = vmatprep.subr.mxu0 %v55
    %1373 = vmatpush1.msra.mxu0 %v54
    %1374 = vmatprep.subr.mxu0 %v59
    %1375 = vmatpush1.msra.mxu0 %v58
    %1376 = vmatprep.subr.mxu0 %v63
    %1377 = vmatpush1.msra.mxu0 %v62
    %1378 = vmatprep.subr.mxu0 %v67
    %1379 = vmatpush1.msra.mxu0 %v66
    %1380 = vmatprep.subr.mxu0 %v71
    %1381 = vmatpush1.msra.mxu0 %v70
    %1382 = vmatprep.subr.mxu0 %v75
    %1383 = vmatpush1.msra.mxu0 %v74
    %1384 = vmatprep.subr.mxu0 %v79
    %1385 = vmatpush1.msra.mxu0 %v78
    %1386 = vmatprep.subr.mxu0 %v83
    %1387 = vmatpush1.msra.mxu0 %v82
    %1388 = vmatprep.subr.mxu0 %v87
    %1389 = vmatpush1.msra.mxu0 %v86
    %1390 = vmatprep.subr.mxu0 %v91
    %1391 = vmatpush1.msra.mxu0 %v90
    %1392 = vmatprep.subr.mxu0 %v95
    %1393 = vmatpush1.msra.mxu0 %v94
    %1394 = vmatprep.subr.mxu0 %v99
    %1395 = vmatpush1.msra.mxu0 %v98
    %1396 = vmatprep.subr.mxu0 %v103
    %1397 = vmatpush1.msra.mxu0 %v102
    %1398 = vmatprep.subr.mxu0 %v107
    %1399 = vmatpush1.msra.mxu0 %v106
    %1400 = vmatprep.subr.mxu0 %v111
    %1401 = vmatpush1.msra.mxu0 %v110
    %1402 = vmatprep.subr.mxu0 0.0
    %1403 = vmatpush1.msra.mxu0 0.0
    %1404 = vmatprep.subr.mxu0 0.0
    %1405 = vmatpush1.msra.mxu0 0.0
    %1406 = vmatprep.subr.mxu0 0.0
    %1407 = vmatpush1.msra.mxu0 0.0
    %1408 = vmatprep.subr.mxu0 0.0
    %1409 = vmatpush1.msra.mxu0 0.0
    %1410 = vmatprep.subr.mxu0 0.0
    %1411 = vmatpush1.msra.mxu0 0.0
    %1412 = vmatprep.subr.mxu0 0.0
    %1413 = vmatpush1.msra.mxu0 0.0
    %1414 = vmatprep.subr.mxu0 0.0
    %1415 = vmatpush1.msra.mxu0 0.0
    %1416 = vmatprep.subr.mxu0 0.0
    %1417 = vmatpush1.msra.mxu0 0.0
    %1418 = vmatprep.subr.mxu0 0.0
    %1419 = vmatpush1.msra.mxu0 0.0
    %1420 = vmatprep.subr.mxu0 0.0
    %1421 = vmatpush1.msra.mxu0 0.0
    %1422 = vmatprep.subr.mxu0 0.0
    %1423 = vmatpush1.msra.mxu0 0.0
    %1424 = vmatprep.subr.mxu0 0.0
    %1425 = vmatpush1.msra.mxu0 0.0
    %1426 = vmatprep.subr.mxu0 0.0
    %1427 = vmatpush1.msra.mxu0 0.0
    %1428 = vmatprep.subr.mxu0 0.0
    %1429 = vmatpush1.msra.mxu0 0.0
    %1430 = vmatprep.subr.mxu0 0.0
    %1431 = vmatpush1.msra.mxu0 0.0
    %1432 = vmatprep.subr.mxu0 0.0
    %1433 = vmatpush1.msra.mxu0 0.0
    %1434 = vmatprep.mubr.f32.mxu0 0.0
    %1435 = vmatmul.mubr.f32.gmra.mrb[0].mxu0 %v1293
    %v1436 = vpop.f32.mrb[0].mxu0
    %v1437 = vadd.f32 0.0, %v1436
    %v1438 = vpop.f32.mrb[0].mxu0
    %v1439 = vadd.f32 0.0, %v1438
    %1440 = vdwg.mxu0
    %v1441 = vadd.f32 %v1295, %v1366
    %v1442 = vadd.f32 %v1296, %v1368
    %v1443 = vadd.f32 %v1297, %v1437
    %v1444 = vadd.f32 %v1298, %v1439
    %v1445 = vmul.f32 %v1441, 0.5
    %v1446 = vtanh.pop %v1445
    %v1447 = vadd.f32 %v1446, 1.0
    %v1448 = vmul.f32 %v1447, 0.5
    %v1449 = vmul.f32 %v1442, 0.5
    %v1450 = vtanh.pop %v1449
    %v1451 = vadd.f32 %v1450, 1.0
    %v1452 = vmul.f32 %v1451, 0.5
    %v1453 = vtanh.pop %v1443
    %v1454 = vmul.f32 %v1444, 0.5
    %v1455 = vtanh.pop %v1454
    %v1456 = vadd.f32 %v1455, 1.0
    %v1457 = vmul.f32 %v1456, 0.5
    %v1458 = vmul.f32 %v1452, %v1291
    %v1459 = vmul.f32 %v1448, %v1453
    %v1460 = vadd.f32 %v1458, %v1459
    %v1461 = vtanh.pop %v1460
    %v1462 = vmul.f32 %v1457, %v1461
    %1463 = vst [vmem:[#allocation2] sm:$0xff] %v1462
    %1464 = vst [vmem:[#allocation3] sm:$0xff] %v1460
    // Predicated region
    $region22: #{tpu_custom_call.1} parent=1 // pred_check
      %p1465 = pneg %p40
    $region23: #{tpu_custom_call.1} parent=1 // pred_check_branch
      %1467 = sbr.rel (%p1465) target = $region25
    $region24: #{tpu_custom_call.1} parent=1 // pred_region
      %v1468 = vld [vmem:[#allocation2] sm:$0xff]
      %1469 = vst [vmem:[#allocation9] sm:$0xff] %v1468
    $region25: #{tpu_custom_call.1} parent=1 // pred_fallthru
      _
    // Predicated region
    $region26: #{tpu_custom_call.1} parent=1 // pred_check
      _
    $region27: #{tpu_custom_call.1} parent=1 // pred_check_branch
      %1471 = sbr.rel (0) target = $region29
    $region28: #{tpu_custom_call.1} parent=1 // pred_region
      %s1473 = ssub.s32 128, 128
      %1474 = vsyncadd [#allocation6], %s1473
      %s1476 = sshll.u32 [#allocation9], 4
      %s1477 = int_to_ptr.vmem [resolvable:$true] %s1476
      %1479 = dma.vmem_to_hbm [thread:$0]  %s1477, 128, %s2, [#allocation6]
    $region29: #{tpu_custom_call.1} parent=1 // pred_fallthru
      _
    // Predicated region
    $region30: #{tpu_custom_call.1} parent=1 // pred_check
      _
    $region31: #{tpu_custom_call.1} parent=1 // pred_check_branch
      %1481 = sbr.rel (0) target = $region33
    $region32: #{tpu_custom_call.1} parent=1 // pred_region
      %1482 = dma.done [#allocation6], 128
    $region33: #{tpu_custom_call.1} parent=1 // pred_fallthru
      _
    %1483 = vsyncpa [#allocation5], 1
    %1484 = vsyncpa [#allocation8], 1
    %1485 = vsyncpa [#allocation6], 1

</llo_original>
